<compile_context>
chip_gen: v7x
topology: tpu7x:2x2x1
jax: 0.10.0
libtpu: 0.0.40
codegen_flags: <defaults>
</compile_context>

<pallas_src>
import functools

import jax
import jax.numpy as jnp
from jax.experimental import pallas as pl
from jax.experimental.pallas import tpu as pltpu

_LANE = 128      # lane width / MXU tile edge
_SUBLANE = 8     # f32 sublane tile


def _round_up(x, m):
    return (x + m - 1) // m * m


def _cdiv(a, b):
    return -(-a // b)


def _activation_fn(name):
    if name == "ELU":
        return lambda x: jnp.where(x > 0, x, jnp.expm1(x))
    if name == "LeakyReLU":
        return lambda x: jnp.where(x > 0, x, 0.01 * x)
    if name == "Tanh":
        return jnp.tanh
    return lambda x: jnp.maximum(x, 0.0)   # ReLU (default)


def _vmem_capacity_bytes():
    try:
        return int(pltpu.get_tpu_info().vmem_capacity_bytes)
    except Exception:
        return 64 * 1024 * 1024   # conservative (v7x per-TensorCore)


def _pick_batch_tile(B, requested=None):
    """256-aligned tile (~512 wide), split into >=2 steps when batch allows
    so the parallel batch axis can be sharded across v7x's 2 TensorCores."""
    if requested is not None:
        return requested
    b_al = _round_up(B, 256)
    if b_al < 512:
        return b_al
    n_tiles = max(2, _cdiv(b_al, 512))
    return _round_up(_cdiv(b_al, n_tiles), 256)


# ----------------------------------------------------------------------------
# Kernels
# ----------------------------------------------------------------------------

def fcnn_resident_kernel(*refs, num_hidden: int, activation: str):
    """All weights VMEM-resident; one grid axis over batch tiles.

    refs = (x, w0, b0, [wh_i, bh_i]*num_hidden, w_out, b_out, o)
      x   : [TB, F_pad]        bf16  original layout (batch rows)
      w   : [out_pad, in_pad]  bf16  PyTorch nn.Linear layout (W, not W.T)
      b   : [out_pad, 1]       f32
      o   : [1, TB]            f32   lane-dense output slab
    """
    act = _activation_fn(activation)

    x_ref = refs[0]
    w0_ref, b0_ref = refs[1], refs[2]
    hidden_refs = refs[3:3 + 2 * num_hidden]
    wout_ref, bout_ref = refs[3 + 2 * num_hidden], refs[4 + 2 * num_hidden]
    o_ref = refs[5 + 2 * num_hidden]

    # Input layer: W0 [N,F] contracted with x [TB,F] over F (NT matmul; the
    # MXU transposes the RHS in-feed).  Result keeps batch on lanes: [N, TB].
    h = jax.lax.dot_general(
        w0_ref[...], x_ref[...],
        dimension_numbers=(((1,), (1,)), ((), ())),
        preferred_element_type=jnp.float32)
    h = act(h + b0_ref[...])

    # Hidden layers: Linear -> activation -> Dropout (identity, eval mode).
    for i in range(num_hidden):
        w_ref = hidden_refs[2 * i]
        b_ref = hidden_refs[2 * i + 1]
        h = jnp.dot(w_ref[...], h.astype(jnp.bfloat16),
                    preferred_element_type=jnp.float32)
        h = act(h + b_ref[...])

    # Classification head ([8, TB], only row 0 live) -> take row 0.
    out = jnp.dot(wout_ref[...], h.astype(jnp.bfloat16),
                  preferred_element_type=jnp.float32) + bout_ref[...]
    o_ref[...] = out[0:1, :].astype(o_ref.dtype)


def fcnn_streamed_kernel(x_ref, w0_ref, b0_ref, wh_ref, bh_ref,
                         wout_ref, bout_ref, o_ref, h_ref, *, activation: str):
    """Layer-streaming variant for models whose weights do not fit VMEM.

    grid = (batch_tiles, num_hidden); hidden weights are streamed one layer
    per step from the stacked [H, N_pad, N_pad] array while the activation
    [N_pad, TB] is carried in a VMEM scratch (f32).
    """
    act = _activation_fn(activation)
    k = pl.program_id(1)

    @pl.when(k == 0)
    def _():
        h0 = jax.lax.dot_general(
            w0_ref[...], x_ref[...],
            dimension_numbers=(((1,), (1,)), ((), ())),
            preferred_element_type=jnp.float32)
        h_ref[...] = act(h0 + b0_ref[...])

    # Hidden layer k (streamed weight block).
    h = jnp.dot(wh_ref[...], h_ref[...].astype(jnp.bfloat16),
                preferred_element_type=jnp.float32)
    h_ref[...] = act(h + bh_ref[...])

    @pl.when(k == pl.num_programs(1) - 1)
    def _():
        out = jnp.dot(wout_ref[...], h_ref[...].astype(jnp.bfloat16),
                      preferred_element_type=jnp.float32) + bout_ref[...]
        o_ref[...] = out[0:1, :].astype(o_ref.dtype)


# ----------------------------------------------------------------------------
# Wrapper
# ----------------------------------------------------------------------------

def fcnn_forward(x, params, *, num_hidden: int, activation: str = "ReLU",
                 batch_tile=None, force_stream: bool = False):
    """x: [B, F] float32; params: flat list [w0, b0, ..., w_out, b_out]
    in PyTorch nn.Linear layout (w: [out, in], b: [out])."""
    B, F = x.shape
    N = params[0].shape[0]

    TB = _pick_batch_tile(B, batch_tile)
    F_pad = _round_up(F, _LANE)
    N_pad = _round_up(N, _LANE)
    B_pad = _round_up(B, TB)
    OUT_pad = _SUBLANE                       # head out-dim 1 -> one f32 sublane tile
    grid_b = B_pad // TB

    # ---- layout plumbing: zero-pad (NO transpose/relayout of x) ------------
    x_p = jnp.pad(x, ((0, B_pad - B), (0, F_pad - F))).astype(jnp.bfloat16)

    def pad_w(w, out_p, in_p):
        return jnp.pad(w.astype(jnp.bfloat16),
                       ((0, out_p - w.shape[0]), (0, in_p - w.shape[1])))

    def pad_b(b, out_p):
        return jnp.pad(b.astype(jnp.float32),
                       (0, out_p - b.shape[0])).reshape(out_p, 1)

    w0 = pad_w(params[0], N_pad, F_pad)
    b0 = pad_b(params[1], N_pad)
    wh = [pad_w(params[2 + 2 * i], N_pad, N_pad) for i in range(num_hidden)]
    bh = [pad_b(params[3 + 2 * i], N_pad) for i in range(num_hidden)]
    wout = pad_w(params[-2], OUT_pad, N_pad)
    bout = pad_b(params[-1], OUT_pad)

    # ---- VMEM budgeting / path selection -----------------------------------
    vmem_cap = _vmem_capacity_bytes()
    param_bytes = (w0.size * 2 + b0.size * 4 + wout.size * 2 + bout.size * 4
                   + sum(w.size * 2 for w in wh) + sum(b.size * 4 for b in bh))
    # streamed x tile (double-buffered) + output tile + live f32 intermediates
    act_bytes = 2 * TB * F_pad * 2 + 2 * TB * 4 + 4 * N_pad * TB * 4
    resident_bytes = param_bytes + act_bytes
    stream_bytes = (w0.size * 2 + b0.size * 4 + wout.size * 2 + bout.size * 4
                    + 2 * (N_pad * N_pad * 2 + N_pad * 4)   # double-buffered hidden layer
                    + N_pad * TB * 4                         # h scratch
                    + act_bytes)

    use_stream = num_hidden > 0 and (
        force_stream or resident_bytes > int(0.7 * vmem_cap))

    if use_stream:
        wh_st = jnp.stack(wh)      # [H, N_pad, N_pad]
        bh_st = jnp.stack(bh)      # [H, N_pad, 1]

    flops = 2 * B_pad * (F_pad * N_pad + num_hidden * N_pad * N_pad
                         + N_pad * OUT_pad)
    transcendentals = (B_pad * N_pad * (num_hidden + 1)
                       if activation in ("Tanh", "ELU") else 0)
    bytes_accessed = int(x_p.size) * 2 + B_pad * 4 + int(
        param_bytes * (grid_b if use_stream else 1))

    # ---- pallas_call builder ------------------------------------------------
    def call(buffered_weights):
        def wspec(shape, index_map):
            # Grid-invariant weight/bias blocks: single buffer (no pointless
            # double-buffering) when supported.
            if buffered_weights:
                return pl.BlockSpec(shape, index_map,
                                    pipeline_mode=pl.Buffered(1))
            return pl.BlockSpec(shape, index_map)

        if use_stream:
            grid = (grid_b, num_hidden)
            im_const = lambda i, k: (0, 0)
            in_specs = [
                pl.BlockSpec((TB, F_pad), lambda i, k: (i, 0)),
                wspec((N_pad, F_pad), im_const),
                wspec((N_pad, 1), im_const),
                pl.BlockSpec((None, N_pad, N_pad), lambda i, k: (k, 0, 0)),
                pl.BlockSpec((None, N_pad, 1), lambda i, k: (k, 0, 0)),
                wspec((OUT_pad, N_pad), im_const),
                wspec((OUT_pad, 1), im_const),
            ]
            out_spec = pl.BlockSpec((1, TB), lambda i, k: (0, i))
            scratch = [pltpu.VMEM((N_pad, TB), jnp.float32)]
            semantics = ("parallel", "arbitrary")
            kern = functools.partial(fcnn_streamed_kernel,
                                     activation=activation)
            args = (x_p, w0, b0, wh_st, bh_st, wout, bout)
            needed = stream_bytes
        else:
            grid = (grid_b,)
            im_const = lambda i: (0, 0)
            in_specs = [pl.BlockSpec((TB, F_pad), lambda i: (i, 0)),
                        wspec((N_pad, F_pad), im_const),
                        wspec((N_pad, 1), im_const)]
            for _ in range(num_hidden):
                in_specs.append(wspec((N_pad, N_pad), im_const))
                in_specs.append(wspec((N_pad, 1), im_const))
            in_specs.append(wspec((OUT_pad, N_pad), im_const))
            in_specs.append(wspec((OUT_pad, 1), im_const))
            out_spec = pl.BlockSpec((1, TB), lambda i: (0, i))
            scratch = []
            semantics = ("parallel",)
            kern = functools.partial(fcnn_resident_kernel,
                                     num_hidden=num_hidden,
                                     activation=activation)
            args = (x_p, w0, b0,
                    *[t for pair in zip(wh, bh) for t in pair], wout, bout)
            needed = (param_bytes if buffered_weights else 2 * param_bytes) \
                + act_bytes

        # Clamp against the real device VMEM (64 MiB/TC on v7x) + headroom.
        vmem_limit = int(max(32 << 20,
                             min(vmem_cap - (2 << 20), needed + (4 << 20))))

        return pl.pallas_call(
            kern,
            out_shape=jax.ShapeDtypeStruct((1, B_pad), jnp.float32),
            grid_spec=pltpu.PrefetchScalarGridSpec(
                num_scalar_prefetch=0,
                grid=grid,
                in_specs=in_specs,
                out_specs=out_spec,
                scratch_shapes=scratch),
            compiler_params=pltpu.CompilerParams(
                dimension_semantics=semantics,
                vmem_limit_bytes=vmem_limit),
            cost_estimate=pl.CostEstimate(
                flops=int(flops), transcendentals=int(transcendentals),
                bytes_accessed=int(bytes_accessed)),
        )(*args)

    try:
        out_t = call(True)
    except Exception:
        # Fallback for JAX versions where pipeline_mode=pl.Buffered(1) is not
        # accepted on a top-level pallas_call BlockSpec.
        out_t = call(False)

    # Lane-dense (1, B_pad) slab -> (B, 1) user layout.
    return out_t[0, :B].reshape(B, 1)


# ----------------------------------------------------------------------------
# Params + pure-JAX reference
# ----------------------------------------------------------------------------

def init_fcnn_params(key, feature_size, num_neurons, num_hidden, gain=0.2):
    """'normal' init: W ~ N(0, gain^2), b = 0 (PyTorch nn.Linear layout)."""
    params = []
    dims = [(num_neurons, feature_size)]
    dims += [(num_neurons, num_neurons)] * num_hidden
    dims += [(1, num_neurons)]
    for (d_out, d_in) in dims:
        key, sub = jax.random.split(key)
        w = gain * jax.random.normal(sub, (d_out, d_in), dtype=jnp.float32)
        b = jnp.zeros((d_out,), dtype=jnp.float32)
        params.extend([w, b])
    return params


def fcnn_reference(x, params, num_hidden, activation="ReLU"):
    """Pure-JAX reference with the same bf16-input / f32-accumulate matmuls."""
    act = _activation_fn(activation)
    bf = jnp.bfloat16
    w0, b0 = params[0], params[1]
    h = jnp.dot(x.astype(bf), w0.T.astype(bf),
                preferred_element_type=jnp.float32) + b0
    h = act(h)
    for i in range(num_hidden):
        w, b = params[2 + 2 * i], params[3 + 2 * i]
        h = jnp.dot(h.astype(bf), w.T.astype(bf),
                    preferred_element_type=jnp.float32) + b
        h = act(h)
    wout, bout = params[-2], params[-1]
    return jnp.dot(h.astype(bf), wout.T.astype(bf),
                   preferred_element_type=jnp.float32) + bout


if __name__ == "__main__":
    # Small shapes consistent with the module.
    batch = 16
    feature_size = 16
    num_neurons = 32
    num_hidden = 2

    key = jax.random.PRNGKey(0)
    kx, kp = jax.random.split(key)
    x = jax.random.normal(kx, (batch, feature_size), dtype=jnp.float32)
    params = init_fcnn_params(kp, feature_size, num_neurons, num_hidden)

    ref = fcnn_reference(x, params, num_hidden)

    # Default (weight-resident) path.
    out = jax.block_until_ready(fcnn_forward(x, params, num_hidden=num_hidden))
    assert out.shape == (batch, 1), out.shape
    err = float(jnp.max(jnp.abs(out - ref)))
    assert jnp.allclose(out, ref, atol=2e-3, rtol=2e-3), err

    # Layer-streaming fallback path (auto-selected when resident weights would
    # not fit VMEM, e.g. large num_neurons on v7x's 64 MiB per TensorCore).
    out_s = jax.block_until_ready(
        fcnn_forward(x, params, num_hidden=num_hidden, force_stream=True))
    err_s = float(jnp.max(jnp.abs(out_s - ref)))
    assert jnp.allclose(out_s, ref, atol=2e-3, rtol=2e-3), err_s

    print("KERNEL_OK")
</pallas_src>

<mosaic_0001>
module attributes {stable_mosaic.version = 11 : i64} {
  func.func @fcnn_resident_kernel(%arg0: i32, %arg1: memref<256x128xbf16, #tpu.memory_space<vmem>>, %arg2: memref<128x128xbf16, #tpu.memory_space<vmem>>, %arg3: memref<128x1xf32, #tpu.memory_space<vmem>>, %arg4: memref<128x128xbf16, #tpu.memory_space<vmem>>, %arg5: memref<128x1xf32, #tpu.memory_space<vmem>>, %arg6: memref<128x128xbf16, #tpu.memory_space<vmem>>, %arg7: memref<128x1xf32, #tpu.memory_space<vmem>>, %arg8: memref<8x128xbf16, #tpu.memory_space<vmem>>, %arg9: memref<8x1xf32, #tpu.memory_space<vmem>>, %arg10: memref<1x256xf32, #tpu.memory_space<vmem>>) attributes {dimension_semantics = [#tpu.dimension_semantics<parallel>], iteration_bounds = array<i64: 1>, scalar_prefetch = 0 : i64, scratch_operands = 0 : i64, tpu.core_type = #tpu.core_type<tc>, window_params = [{transform_indices = @transform_0, window_bounds = array<i64: 256, 128>}, {pipeline_mode = #tpu.pipeline_mode<synchronous>, transform_indices = @transform_1, window_bounds = array<i64: 128, 128>}, {pipeline_mode = #tpu.pipeline_mode<synchronous>, transform_indices = @transform_2, window_bounds = array<i64: 128, 1>}, {pipeline_mode = #tpu.pipeline_mode<synchronous>, transform_indices = @transform_3, window_bounds = array<i64: 128, 128>}, {pipeline_mode = #tpu.pipeline_mode<synchronous>, transform_indices = @transform_4, window_bounds = array<i64: 128, 1>}, {pipeline_mode = #tpu.pipeline_mode<synchronous>, transform_indices = @transform_5, window_bounds = array<i64: 128, 128>}, {pipeline_mode = #tpu.pipeline_mode<synchronous>, transform_indices = @transform_6, window_bounds = array<i64: 128, 1>}, {pipeline_mode = #tpu.pipeline_mode<synchronous>, transform_indices = @transform_7, window_bounds = array<i64: 8, 128>}, {pipeline_mode = #tpu.pipeline_mode<synchronous>, transform_indices = @transform_8, window_bounds = array<i64: 8, 1>}, {transform_indices = @transform_9, window_bounds = array<i64: 1, 256>}]} {
    %c0 = arith.constant 0 : index
    %c0_0 = arith.constant 0 : index
    %0 = vector.load %arg2[%c0, %c0_0] : memref<128x128xbf16, #tpu.memory_space<vmem>>, vector<128x128xbf16>
    %c0_1 = arith.constant 0 : index
    %c0_2 = arith.constant 0 : index
    %1 = vector.load %arg1[%c0_1, %c0_2] : memref<256x128xbf16, #tpu.memory_space<vmem>>, vector<256x128xbf16>
    %cst = arith.constant dense<0.000000e+00> : vector<128x256xf32>
    %2 = tpu.matmul %0, %1, %cst {dimension_numbers = #tpu.dot_dimension_numbers<[1], [1], [0], [0], [0, 0, 1, 0], [], []>} : vector<128x128xbf16>, vector<256x128xbf16>, vector<128x256xf32> -> vector<128x256xf32>
    %c0_3 = arith.constant 0 : index
    %c0_4 = arith.constant 0 : index
    %3 = vector.load %arg3[%c0_3, %c0_4] : memref<128x1xf32, #tpu.memory_space<vmem>>, vector<128x1xf32>
    %4 = vector.broadcast %3 : vector<128x1xf32> to vector<128x256xf32>
    %5 = arith.addf %2, %4 : vector<128x256xf32>
    %cst_5 = arith.constant 0.000000e+00 : f32
    %6 = vector.broadcast %cst_5 : f32 to vector<128x256xf32>
    %7 = arith.maximumf %5, %6 : vector<128x256xf32>
    %c0_6 = arith.constant 0 : index
    %c0_7 = arith.constant 0 : index
    %8 = vector.load %arg4[%c0_6, %c0_7] : memref<128x128xbf16, #tpu.memory_space<vmem>>, vector<128x128xbf16>
    %9 = arith.truncf %7 : vector<128x256xf32> to vector<128x256xbf16>
    %cst_8 = arith.constant dense<0.000000e+00> : vector<128x256xf32>
    %10 = tpu.matmul %8, %9, %cst_8 {dimension_numbers = #tpu.dot_dimension_numbers<[1], [0], [0], [1], [0, 0, 1, 1], [], []>} : vector<128x128xbf16>, vector<128x256xbf16>, vector<128x256xf32> -> vector<128x256xf32>
    %c0_9 = arith.constant 0 : index
    %c0_10 = arith.constant 0 : index
    %11 = vector.load %arg5[%c0_9, %c0_10] : memref<128x1xf32, #tpu.memory_space<vmem>>, vector<128x1xf32>
    %12 = vector.broadcast %11 : vector<128x1xf32> to vector<128x256xf32>
    %13 = arith.addf %10, %12 : vector<128x256xf32>
    %cst_11 = arith.constant 0.000000e+00 : f32
    %14 = vector.broadcast %cst_11 : f32 to vector<128x256xf32>
    %15 = arith.maximumf %13, %14 : vector<128x256xf32>
    %c0_12 = arith.constant 0 : index
    %c0_13 = arith.constant 0 : index
    %16 = vector.load %arg6[%c0_12, %c0_13] : memref<128x128xbf16, #tpu.memory_space<vmem>>, vector<128x128xbf16>
    %17 = arith.truncf %15 : vector<128x256xf32> to vector<128x256xbf16>
    %cst_14 = arith.constant dense<0.000000e+00> : vector<128x256xf32>
    %18 = tpu.matmul %16, %17, %cst_14 {dimension_numbers = #tpu.dot_dimension_numbers<[1], [0], [0], [1], [0, 0, 1, 1], [], []>} : vector<128x128xbf16>, vector<128x256xbf16>, vector<128x256xf32> -> vector<128x256xf32>
    %c0_15 = arith.constant 0 : index
    %c0_16 = arith.constant 0 : index
    %19 = vector.load %arg7[%c0_15, %c0_16] : memref<128x1xf32, #tpu.memory_space<vmem>>, vector<128x1xf32>
    %20 = vector.broadcast %19 : vector<128x1xf32> to vector<128x256xf32>
    %21 = arith.addf %18, %20 : vector<128x256xf32>
    %cst_17 = arith.constant 0.000000e+00 : f32
    %22 = vector.broadcast %cst_17 : f32 to vector<128x256xf32>
    %23 = arith.maximumf %21, %22 : vector<128x256xf32>
    %c0_18 = arith.constant 0 : index
    %c0_19 = arith.constant 0 : index
    %24 = vector.load %arg8[%c0_18, %c0_19] : memref<8x128xbf16, #tpu.memory_space<vmem>>, vector<8x128xbf16>
    %25 = arith.truncf %23 : vector<128x256xf32> to vector<128x256xbf16>
    %cst_20 = arith.constant dense<0.000000e+00> : vector<8x256xf32>
    %26 = tpu.matmul %24, %25, %cst_20 {dimension_numbers = #tpu.dot_dimension_numbers<[1], [0], [0], [1], [0, 0, 1, 1], [], []>} : vector<8x128xbf16>, vector<128x256xbf16>, vector<8x256xf32> -> vector<8x256xf32>
    %c0_21 = arith.constant 0 : index
    %c0_22 = arith.constant 0 : index
    %27 = vector.load %arg9[%c0_21, %c0_22] : memref<8x1xf32, #tpu.memory_space<vmem>>, vector<8x1xf32>
    %28 = vector.broadcast %27 : vector<8x1xf32> to vector<8x256xf32>
    %29 = arith.addf %26, %28 : vector<8x256xf32>
    %30 = vector.extract_strided_slice %29 {offsets = [0, 0], sizes = [1, 256], strides = [1, 1]} : vector<8x256xf32> to vector<1x256xf32>
    %c0_23 = arith.constant 0 : index
    %c0_24 = arith.constant 0 : index
    %31 = vector.load %arg10[%c0_23, %c0_24] : memref<1x256xf32, #tpu.memory_space<vmem>>, vector<1x256xf32>
    tpu.vector_store %arg10[%c0_23, %c0_24], %30 {strides = array<i32>} : memref<1x256xf32, #tpu.memory_space<vmem>>, vector<1x256xf32>,
    return
  }
  func.func @transform_0(%arg0: i32) -> (i32, i32) {
    %c0_i32 = arith.constant 0 : i32
    %c0_i32_0 = arith.constant 0 : i32
    return %arg0, %c0_i32 : i32, i32
  }
  func.func @transform_1(%arg0: i32) -> (i32, i32) {
    %c0_i32 = arith.constant 0 : i32
    %c0_i32_0 = arith.constant 0 : i32
    %c0_i32_1 = arith.constant 0 : i32
    return %c0_i32, %c0_i32_0 : i32, i32
  }
  func.func @transform_2(%arg0: i32) -> (i32, i32) {
    %c0_i32 = arith.constant 0 : i32
    %c0_i32_0 = arith.constant 0 : i32
    %c0_i32_1 = arith.constant 0 : i32
    return %c0_i32, %c0_i32_0 : i32, i32
  }
  func.func @transform_3(%arg0: i32) -> (i32, i32) {
    %c0_i32 = arith.constant 0 : i32
    %c0_i32_0 = arith.constant 0 : i32
    %c0_i32_1 = arith.constant 0 : i32
    return %c0_i32, %c0_i32_0 : i32, i32
  }
  func.func @transform_4(%arg0: i32) -> (i32, i32) {
    %c0_i32 = arith.constant 0 : i32
    %c0_i32_0 = arith.constant 0 : i32
    %c0_i32_1 = arith.constant 0 : i32
    return %c0_i32, %c0_i32_0 : i32, i32
  }
  func.func @transform_5(%arg0: i32) -> (i32, i32) {
    %c0_i32 = arith.constant 0 : i32
    %c0_i32_0 = arith.constant 0 : i32
    %c0_i32_1 = arith.constant 0 : i32
    return %c0_i32, %c0_i32_0 : i32, i32
  }
  func.func @transform_6(%arg0: i32) -> (i32, i32) {
    %c0_i32 = arith.constant 0 : i32
    %c0_i32_0 = arith.constant 0 : i32
    %c0_i32_1 = arith.constant 0 : i32
    return %c0_i32, %c0_i32_0 : i32, i32
  }
  func.func @transform_7(%arg0: i32) -> (i32, i32) {
    %c0_i32 = arith.constant 0 : i32
    %c0_i32_0 = arith.constant 0 : i32
    %c0_i32_1 = arith.constant 0 : i32
    return %c0_i32, %c0_i32_0 : i32, i32
  }
  func.func @transform_8(%arg0: i32) -> (i32, i32) {
    %c0_i32 = arith.constant 0 : i32
    %c0_i32_0 = arith.constant 0 : i32
    %c0_i32_1 = arith.constant 0 : i32
    return %c0_i32, %c0_i32_0 : i32, i32
  }
  func.func @transform_9(%arg0: i32) -> (i32, i32) {
    %c0_i32 = arith.constant 0 : i32
    %c0_i32_0 = arith.constant 0 : i32
    return %c0_i32, %arg0 : i32, i32
  }
}

module attributes {stable_mosaic.version = 11 : i64} {
  func.func @fcnn_resident_kernel(%arg0: i32, %arg1: memref<256x128xbf16, #tpu.memory_space<vmem>>, %arg2: memref<128x128xbf16, #tpu.memory_space<vmem>>, %arg3: memref<128x1xf32, #tpu.memory_space<vmem>>, %arg4: memref<128x128xbf16, #tpu.memory_space<vmem>>, %arg5: memref<128x1xf32, #tpu.memory_space<vmem>>, %arg6: memref<128x128xbf16, #tpu.memory_space<vmem>>, %arg7: memref<128x1xf32, #tpu.memory_space<vmem>>, %arg8: memref<8x128xbf16, #tpu.memory_space<vmem>>, %arg9: memref<8x1xf32, #tpu.memory_space<vmem>>, %arg10: memref<1x256xf32, #tpu.memory_space<vmem>>) attributes {dimension_semantics = [#tpu.dimension_semantics<parallel>], iteration_bounds = array<i64: 1>, scalar_prefetch = 0 : i64, scratch_operands = 0 : i64, tpu.core_type = #tpu.core_type<tc>, window_params = [{transform_indices = @transform_0, window_bounds = array<i64: 256, 128>}, {pipeline_mode = #tpu.pipeline_mode<synchronous>, transform_indices = @transform_1, window_bounds = array<i64: 128, 128>}, {pipeline_mode = #tpu.pipeline_mode<synchronous>, transform_indices = @transform_2, window_bounds = array<i64: 128, 1>}, {pipeline_mode = #tpu.pipeline_mode<synchronous>, transform_indices = @transform_3, window_bounds = array<i64: 128, 128>}, {pipeline_mode = #tpu.pipeline_mode<synchronous>, transform_indices = @transform_4, window_bounds = array<i64: 128, 1>}, {pipeline_mode = #tpu.pipeline_mode<synchronous>, transform_indices = @transform_5, window_bounds = array<i64: 128, 128>}, {pipeline_mode = #tpu.pipeline_mode<synchronous>, transform_indices = @transform_6, window_bounds = array<i64: 128, 1>}, {pipeline_mode = #tpu.pipeline_mode<synchronous>, transform_indices = @transform_7, window_bounds = array<i64: 8, 128>}, {pipeline_mode = #tpu.pipeline_mode<synchronous>, transform_indices = @transform_8, window_bounds = array<i64: 8, 1>}, {transform_indices = @transform_9, window_bounds = array<i64: 1, 256>}]} {
    %c0 = arith.constant 0 : index
    %c0_0 = arith.constant 0 : index
    %0 = vector.load %arg2[%c0, %c0_0] : memref<128x128xbf16, #tpu.memory_space<vmem>>, vector<128x128xbf16>
    %c0_1 = arith.constant 0 : index
    %c0_2 = arith.constant 0 : index
    %1 = vector.load %arg1[%c0_1, %c0_2] : memref<256x128xbf16, #tpu.memory_space<vmem>>, vector<256x128xbf16>
    %cst = arith.constant dense<0.000000e+00> : vector<128x256xf32>
    %2 = tpu.matmul %0, %1, %cst {dimension_numbers = #tpu.dot_dimension_numbers<[1], [1], [0], [0], [0, 0, 1, 0], [], []>} : vector<128x128xbf16>, vector<256x128xbf16>, vector<128x256xf32> -> vector<128x256xf32>
    %c0_3 = arith.constant 0 : index
    %c0_4 = arith.constant 0 : index
    %3 = vector.load %arg3[%c0_3, %c0_4] : memref<128x1xf32, #tpu.memory_space<vmem>>, vector<128x1xf32>
    %4 = vector.broadcast %3 : vector<128x1xf32> to vector<128x256xf32>
    %5 = arith.addf %2, %4 : vector<128x256xf32>
    %cst_5 = arith.constant 0.000000e+00 : f32
    %6 = vector.broadcast %cst_5 : f32 to vector<128x256xf32>
    %7 = arith.maximumf %5, %6 : vector<128x256xf32>
    %c0_6 = arith.constant 0 : index
    %c0_7 = arith.constant 0 : index
    %8 = vector.load %arg4[%c0_6, %c0_7] : memref<128x128xbf16, #tpu.memory_space<vmem>>, vector<128x128xbf16>
    %9 = arith.truncf %7 : vector<128x256xf32> to vector<128x256xbf16>
    %cst_8 = arith.constant dense<0.000000e+00> : vector<128x256xf32>
    %10 = tpu.matmul %8, %9, %cst_8 {dimension_numbers = #tpu.dot_dimension_numbers<[1], [0], [0], [1], [0, 0, 1, 1], [], []>} : vector<128x128xbf16>, vector<128x256xbf16>, vector<128x256xf32> -> vector<128x256xf32>
    %c0_9 = arith.constant 0 : index
    %c0_10 = arith.constant 0 : index
    %11 = vector.load %arg5[%c0_9, %c0_10] : memref<128x1xf32, #tpu.memory_space<vmem>>, vector<128x1xf32>
    %12 = vector.broadcast %11 : vector<128x1xf32> to vector<128x256xf32>
    %13 = arith.addf %10, %12 : vector<128x256xf32>
    %cst_11 = arith.constant 0.000000e+00 : f32
    %14 = vector.broadcast %cst_11 : f32 to vector<128x256xf32>
    %15 = arith.maximumf %13, %14 : vector<128x256xf32>
    %c0_12 = arith.constant 0 : index
    %c0_13 = arith.constant 0 : index
    %16 = vector.load %arg6[%c0_12, %c0_13] : memref<128x128xbf16, #tpu.memory_space<vmem>>, vector<128x128xbf16>
    %17 = arith.truncf %15 : vector<128x256xf32> to vector<128x256xbf16>
    %cst_14 = arith.constant dense<0.000000e+00> : vector<128x256xf32>
    %18 = tpu.matmul %16, %17, %cst_14 {dimension_numbers = #tpu.dot_dimension_numbers<[1], [0], [0], [1], [0, 0, 1, 1], [], []>} : vector<128x128xbf16>, vector<128x256xbf16>, vector<128x256xf32> -> vector<128x256xf32>
    %c0_15 = arith.constant 0 : index
    %c0_16 = arith.constant 0 : index
    %19 = vector.load %arg7[%c0_15, %c0_16] : memref<128x1xf32, #tpu.memory_space<vmem>>, vector<128x1xf32>
    %20 = vector.broadcast %19 : vector<128x1xf32> to vector<128x256xf32>
    %21 = arith.addf %18, %20 : vector<128x256xf32>
    %cst_17 = arith.constant 0.000000e+00 : f32
    %22 = vector.broadcast %cst_17 : f32 to vector<128x256xf32>
    %23 = arith.maximumf %21, %22 : vector<128x256xf32>
    %c0_18 = arith.constant 0 : index
    %c0_19 = arith.constant 0 : index
    %24 = vector.load %arg8[%c0_18, %c0_19] : memref<8x128xbf16, #tpu.memory_space<vmem>>, vector<8x128xbf16>
    %25 = arith.truncf %23 : vector<128x256xf32> to vector<128x256xbf16>
    %cst_20 = arith.constant dense<0.000000e+00> : vector<8x256xf32>
    %26 = tpu.matmul %24, %25, %cst_20 {dimension_numbers = #tpu.dot_dimension_numbers<[1], [0], [0], [1], [0, 0, 1, 1], [], []>} : vector<8x128xbf16>, vector<128x256xbf16>, vector<8x256xf32> -> vector<8x256xf32>
    %c0_21 = arith.constant 0 : index
    %c0_22 = arith.constant 0 : index
    %27 = vector.load %arg9[%c0_21, %c0_22] : memref<8x1xf32, #tpu.memory_space<vmem>>, vector<8x1xf32>
    %28 = vector.broadcast %27 : vector<8x1xf32> to vector<8x256xf32>
    %29 = arith.addf %26, %28 : vector<8x256xf32>
    %30 = vector.extract_strided_slice %29 {offsets = [0, 0], sizes = [1, 256], strides = [1, 1]} : vector<8x256xf32> to vector<1x256xf32>
    %c0_23 = arith.constant 0 : index
    %c0_24 = arith.constant 0 : index
    %31 = vector.load %arg10[%c0_23, %c0_24] : memref<1x256xf32, #tpu.memory_space<vmem>>, vector<1x256xf32>
    tpu.vector_store %arg10[%c0_23, %c0_24], %30 {strides = array<i32>} : memref<1x256xf32, #tpu.memory_space<vmem>>, vector<1x256xf32>,
    return
  }
  func.func @transform_0(%arg0: i32) -> (i32, i32) {
    %c0_i32 = arith.constant 0 : i32
    %c0_i32_0 = arith.constant 0 : i32
    return %arg0, %c0_i32 : i32, i32
  }
  func.func @transform_1(%arg0: i32) -> (i32, i32) {
    %c0_i32 = arith.constant 0 : i32
    %c0_i32_0 = arith.constant 0 : i32
    %c0_i32_1 = arith.constant 0 : i32
    return %c0_i32, %c0_i32_0 : i32, i32
  }
  func.func @transform_2(%arg0: i32) -> (i32, i32) {
    %c0_i32 = arith.constant 0 : i32
    %c0_i32_0 = arith.constant 0 : i32
    %c0_i32_1 = arith.constant 0 : i32
    return %c0_i32, %c0_i32_0 : i32, i32
  }
  func.func @transform_3(%arg0: i32) -> (i32, i32) {
    %c0_i32 = arith.constant 0 : i32
    %c0_i32_0 = arith.constant 0 : i32
    %c0_i32_1 = arith.constant 0 : i32
    return %c0_i32, %c0_i32_0 : i32, i32
  }
  func.func @transform_4(%arg0: i32) -> (i32, i32) {
    %c0_i32 = arith.constant 0 : i32
    %c0_i32_0 = arith.constant 0 : i32
    %c0_i32_1 = arith.constant 0 : i32
    return %c0_i32, %c0_i32_0 : i32, i32
  }
  func.func @transform_5(%arg0: i32) -> (i32, i32) {
    %c0_i32 = arith.constant 0 : i32
    %c0_i32_0 = arith.constant 0 : i32
    %c0_i32_1 = arith.constant 0 : i32
    return %c0_i32, %c0_i32_0 : i32, i32
  }
  func.func @transform_6(%arg0: i32) -> (i32, i32) {
    %c0_i32 = arith.constant 0 : i32
    %c0_i32_0 = arith.constant 0 : i32
    %c0_i32_1 = arith.constant 0 : i32
    return %c0_i32, %c0_i32_0 : i32, i32
  }
  func.func @transform_7(%arg0: i32) -> (i32, i32) {
    %c0_i32 = arith.constant 0 : i32
    %c0_i32_0 = arith.constant 0 : i32
    %c0_i32_1 = arith.constant 0 : i32
    return %c0_i32, %c0_i32_0 : i32, i32
  }
  func.func @transform_8(%arg0: i32) -> (i32, i32) {
    %c0_i32 = arith.constant 0 : i32
    %c0_i32_0 = arith.constant 0 : i32
    %c0_i32_1 = arith.constant 0 : i32
    return %c0_i32, %c0_i32_0 : i32, i32
  }
  func.func @transform_9(%arg0: i32) -> (i32, i32) {
    %c0_i32 = arith.constant 0 : i32
    %c0_i32_0 = arith.constant 0 : i32
    return %c0_i32, %arg0 : i32, i32
  }
}

</mosaic_0001>

<llo_original>
// kernel: tpu_custom_call.1
$region0: #{tpu_custom_call.1}
  #allocation0 [shape = 'u32[]', space=smem, size = 0x4, offset = 0x4, fixed_abs, tag = 'smem constant byte address 0x4 - core index']
  #allocation1 [shape = 'u32[144,128]{1,0:T(1,128)}', space=vmem, size = 0x12000, scoped, tag = 'internal scratch']
  %s0 = inlined_call_operand.vmem [shape: bf16[256,128], index: 0, kind: input, shape index: {}]
  %s1 = inlined_call_operand.vmem [shape: bf16[128,128], index: 1, kind: input, shape index: {}]
  %s2 = inlined_call_operand.vmem [shape: f32[128,1], index: 2, kind: input, shape index: {}]
  %s3 = inlined_call_operand.vmem [shape: bf16[128,128], index: 3, kind: input, shape index: {}]
  %s4 = inlined_call_operand.vmem [shape: f32[128,1], index: 4, kind: input, shape index: {}]
  %s5 = inlined_call_operand.vmem [shape: bf16[128,128], index: 5, kind: input, shape index: {}]
  %s6 = inlined_call_operand.vmem [shape: f32[128,1], index: 6, kind: input, shape index: {}]
  %s7 = inlined_call_operand.vmem [shape: bf16[8,128], index: 7, kind: input, shape index: {}]
  %s8 = inlined_call_operand.vmem [shape: f32[8,1], index: 8, kind: input, shape index: {}]
  %s9 = inlined_call_operand.hbm [shape: f32[1,256], index: 9, kind: output, shape index: {}]
  %s10 = sld [smem:[#allocation0]]
  $region46: #{tpu_custom_call.1} parent=0
    _
  %s12 = ssub.s32 1, %s10
  %s13 = scalar_select 0, %s12, %s10
  $region1: #{tpu_custom_call.1} parent=0
    #allocation2 [shape = 'u8[1024]{0}', space=vmem, size = 0x400, scoped, tag = 'output window, operand 0, single buffered']
    #allocation3 [shape = 's32[1]{0}', space=sflag, size = 0x4, scoped, tag = 'scoped memory for tpu_custom_call.1']
    %14 = vsyncpa [#allocation3], 0
    // Predicated region
    $region2: #{tpu_custom_call.1} parent=1 // pred_check
      _
    $region3: #{tpu_custom_call.1} parent=1 // pred_check_branch
      %16 = sbr.rel (0) target = $region5
    $region4: #{tpu_custom_call.1} parent=1 // pred_region
      _
    $region5: #{tpu_custom_call.1} parent=1 // pred_fallthru
      _
    // Predicated region
    $region6: #{tpu_custom_call.1} parent=1 // pred_check
      _
    $region7: #{tpu_custom_call.1} parent=1 // pred_check_branch
      %18 = sbr.rel (0) target = $region9
    $region8: #{tpu_custom_call.1} parent=1 // pred_region
      _
    $region9: #{tpu_custom_call.1} parent=1 // pred_fallthru
      _
    // Predicated region
    $region10: #{tpu_custom_call.1} parent=1 // pred_check
      _
    $region11: #{tpu_custom_call.1} parent=1 // pred_check_branch
      %20 = sbr.rel (0) target = $region13
    $region12: #{tpu_custom_call.1} parent=1 // pred_region
      _
    $region13: #{tpu_custom_call.1} parent=1 // pred_fallthru
      _
    // Predicated region
    $region14: #{tpu_custom_call.1} parent=1 // pred_check
      _
    $region15: #{tpu_custom_call.1} parent=1 // pred_check_branch
      %22 = sbr.rel (0) target = $region17
    $region16: #{tpu_custom_call.1} parent=1 // pred_region
      _
    $region17: #{tpu_custom_call.1} parent=1 // pred_fallthru
      _
    // Predicated region
    $region18: #{tpu_custom_call.1} parent=1 // pred_check
      _
    $region19: #{tpu_custom_call.1} parent=1 // pred_check_branch
      %24 = sbr.rel (0) target = $region21
    $region20: #{tpu_custom_call.1} parent=1 // pred_region
      _
    $region21: #{tpu_custom_call.1} parent=1 // pred_fallthru
      _
    // Predicated region
    $region22: #{tpu_custom_call.1} parent=1 // pred_check
      _
    $region23: #{tpu_custom_call.1} parent=1 // pred_check_branch
      %26 = sbr.rel (0) target = $region25
    $region24: #{tpu_custom_call.1} parent=1 // pred_region
      _
    $region25: #{tpu_custom_call.1} parent=1 // pred_fallthru
      _
    // Predicated region
    $region26: #{tpu_custom_call.1} parent=1 // pred_check
      _
    $region27: #{tpu_custom_call.1} parent=1 // pred_check_branch
      %28 = sbr.rel (0) target = $region29
    $region28: #{tpu_custom_call.1} parent=1 // pred_region
      _
    $region29: #{tpu_custom_call.1} parent=1 // pred_fallthru
      _
    // Predicated region
    $region30: #{tpu_custom_call.1} parent=1 // pred_check
      _
    $region31: #{tpu_custom_call.1} parent=1 // pred_check_branch
      %30 = sbr.rel (0) target = $region33
    $region32: #{tpu_custom_call.1} parent=1 // pred_region
      _
    $region33: #{tpu_custom_call.1} parent=1 // pred_fallthru
      _
    // Predicated region
    $region34: #{tpu_custom_call.1} parent=1 // pred_check
      _
    $region35: #{tpu_custom_call.1} parent=1 // pred_check_branch
      %32 = sbr.rel (0) target = $region37
    $region36: #{tpu_custom_call.1} parent=1 // pred_region
      _
    $region37: #{tpu_custom_call.1} parent=1 // pred_fallthru
      _
    %v34 = vld [vmem:[%s1] sm:$0xf]
    %v35 = vld [vmem:[%s1 + $0x4] sm:$0xf]
    %v36 = vld [vmem:[%s1 + $0x8] sm:$0xf]
    %v37 = vld [vmem:[%s1 + $0xc] sm:$0xf]
    %v38 = vld [vmem:[%s1 + $0x10] sm:$0xf]
    %v39 = vld [vmem:[%s1 + $0x14] sm:$0xf]
    %v40 = vld [vmem:[%s1 + $0x18] sm:$0xf]
    %v41 = vld [vmem:[%s1 + $0x1c] sm:$0xf]
    %v42 = vld [vmem:[%s1 + $0x20] sm:$0xf]
    %v43 = vld [vmem:[%s1 + $0x24] sm:$0xf]
    %v44 = vld [vmem:[%s1 + $0x28] sm:$0xf]
    %v45 = vld [vmem:[%s1 + $0x2c] sm:$0xf]
    %v46 = vld [vmem:[%s1 + $0x30] sm:$0xf]
    %v47 = vld [vmem:[%s1 + $0x34] sm:$0xf]
    %v48 = vld [vmem:[%s1 + $0x38] sm:$0xf]
    %v49 = vld [vmem:[%s1 + $0x3c] sm:$0xf]
    %v50 = vld [vmem:[%s0] sm:$0xf]
    %v51 = vld [vmem:[%s0 + $0x4] sm:$0xf]
    %v52 = vld [vmem:[%s0 + $0x8] sm:$0xf]
    %v53 = vld [vmem:[%s0 + $0xc] sm:$0xf]
    %v54 = vld [vmem:[%s0 + $0x10] sm:$0xf]
    %v55 = vld [vmem:[%s0 + $0x14] sm:$0xf]
    %v56 = vld [vmem:[%s0 + $0x18] sm:$0xf]
    %v57 = vld [vmem:[%s0 + $0x1c] sm:$0xf]
    %v58 = vld [vmem:[%s0 + $0x20] sm:$0xf]
    %v59 = vld [vmem:[%s0 + $0x24] sm:$0xf]
    %v60 = vld [vmem:[%s0 + $0x28] sm:$0xf]
    %v61 = vld [vmem:[%s0 + $0x2c] sm:$0xf]
    %v62 = vld [vmem:[%s0 + $0x30] sm:$0xf]
    %v63 = vld [vmem:[%s0 + $0x34] sm:$0xf]
    %v64 = vld [vmem:[%s0 + $0x38] sm:$0xf]
    %v65 = vld [vmem:[%s0 + $0x3c] sm:$0xf]
    %v66 = vld [vmem:[%s0 + $0x40] sm:$0xf]
    %v67 = vld [vmem:[%s0 + $0x44] sm:$0xf]
    %v68 = vld [vmem:[%s0 + $0x48] sm:$0xf]
    %v69 = vld [vmem:[%s0 + $0x4c] sm:$0xf]
    %v70 = vld [vmem:[%s0 + $0x50] sm:$0xf]
    %v71 = vld [vmem:[%s0 + $0x54] sm:$0xf]
    %v72 = vld [vmem:[%s0 + $0x58] sm:$0xf]
    %v73 = vld [vmem:[%s0 + $0x5c] sm:$0xf]
    %v74 = vld [vmem:[%s0 + $0x60] sm:$0xf]
    %v75 = vld [vmem:[%s0 + $0x64] sm:$0xf]
    %v76 = vld [vmem:[%s0 + $0x68] sm:$0xf]
    %v77 = vld [vmem:[%s0 + $0x6c] sm:$0xf]
    %v78 = vld [vmem:[%s0 + $0x70] sm:$0xf]
    %v79 = vld [vmem:[%s0 + $0x74] sm:$0xf]
    %v80 = vld [vmem:[%s0 + $0x78] sm:$0xf]
    %v81 = vld [vmem:[%s0 + $0x7c] sm:$0xf]
    %v82 = vld [vmem:[%s2] sm:$0xff]
    %v83 = vld [vmem:[%s2 + $0x8] sm:$0xff]
    %v84 = vld [vmem:[%s2 + $0x10] sm:$0xff]
    %v85 = vld [vmem:[%s2 + $0x18] sm:$0xff]
    %v86 = vld [vmem:[%s2 + $0x20] sm:$0xff]
    %v87 = vld [vmem:[%s2 + $0x28] sm:$0xff]
    %v88 = vld [vmem:[%s2 + $0x30] sm:$0xff]
    %v89 = vld [vmem:[%s2 + $0x38] sm:$0xff]
    %v90 = vld [vmem:[%s2 + $0x40] sm:$0xff]
    %v91 = vld [vmem:[%s2 + $0x48] sm:$0xff]
    %v92 = vld [vmem:[%s2 + $0x50] sm:$0xff]
    %v93 = vld [vmem:[%s2 + $0x58] sm:$0xff]
    %v94 = vld [vmem:[%s2 + $0x60] sm:$0xff]
    %v95 = vld [vmem:[%s2 + $0x68] sm:$0xff]
    %v96 = vld [vmem:[%s2 + $0x70] sm:$0xff]
    %v97 = vld [vmem:[%s2 + $0x78] sm:$0xff]
    %99 = vset.pattern.permute.xlu0 0
    %100 = vperm.xlu0 %99, %v82
    %v101 = vpop.permute.xlu0 %100
    %104 = vset.pattern.permute.xlu0 0
    %105 = vperm.xlu0 %104, %v83
    %v106 = vpop.permute.xlu0 %105
    %109 = vset.pattern.permute.xlu0 0
    %110 = vperm.xlu0 %109, %v84
    %v111 = vpop.permute.xlu0 %110
    %114 = vset.pattern.permute.xlu0 0
    %115 = vperm.xlu0 %114, %v85
    %v116 = vpop.permute.xlu0 %115
    %119 = vset.pattern.permute.xlu0 0
    %120 = vperm.xlu0 %119, %v86
    %v121 = vpop.permute.xlu0 %120
    %124 = vset.pattern.permute.xlu0 0
    %125 = vperm.xlu0 %124, %v87
    %v126 = vpop.permute.xlu0 %125
    %129 = vset.pattern.permute.xlu0 0
    %130 = vperm.xlu0 %129, %v88
    %v131 = vpop.permute.xlu0 %130
    %134 = vset.pattern.permute.xlu0 0
    %135 = vperm.xlu0 %134, %v89
    %v136 = vpop.permute.xlu0 %135
    %139 = vset.pattern.permute.xlu0 0
    %140 = vperm.xlu0 %139, %v90
    %v141 = vpop.permute.xlu0 %140
    %144 = vset.pattern.permute.xlu0 0
    %145 = vperm.xlu0 %144, %v91
    %v146 = vpop.permute.xlu0 %145
    %149 = vset.pattern.permute.xlu0 0
    %150 = vperm.xlu0 %149, %v92
    %v151 = vpop.permute.xlu0 %150
    %154 = vset.pattern.permute.xlu0 0
    %155 = vperm.xlu0 %154, %v93
    %v156 = vpop.permute.xlu0 %155
    %159 = vset.pattern.permute.xlu0 0
    %160 = vperm.xlu0 %159, %v94
    %v161 = vpop.permute.xlu0 %160
    %164 = vset.pattern.permute.xlu0 0
    %165 = vperm.xlu0 %164, %v95
    %v166 = vpop.permute.xlu0 %165
    %169 = vset.pattern.permute.xlu0 0
    %170 = vperm.xlu0 %169, %v96
    %v171 = vpop.permute.xlu0 %170
    %174 = vset.pattern.permute.xlu0 0
    %175 = vperm.xlu0 %174, %v97
    %v176 = vpop.permute.xlu0 %175
    %v194 = vunpack.c.l.b16 %v34
    %v195 = vunpack.c.l.b16 %v35
    %v196 = vunpack.c.l.b16 %v36
    %v197 = vunpack.c.l.b16 %v37
    %v198 = vunpack.c.l.b16 %v38
    %v199 = vunpack.c.l.b16 %v39
    %v200 = vunpack.c.l.b16 %v40
    %v201 = vunpack.c.l.b16 %v41
    %v202 = vunpack.c.l.b16 %v42
    %v203 = vunpack.c.l.b16 %v43
    %v204 = vunpack.c.l.b16 %v44
    %v205 = vunpack.c.l.b16 %v45
    %v206 = vunpack.c.l.b16 %v46
    %v207 = vunpack.c.l.b16 %v47
    %v208 = vunpack.c.l.b16 %v48
    %v209 = vunpack.c.l.b16 %v49
    %v210 = vpack.c.b16 %v195, %v194
    %v211 = vpack.c.b16 %v197, %v196
    %v212 = vpack.c.b16 %v199, %v198
    %v213 = vpack.c.b16 %v201, %v200
    %v214 = vpack.c.b16 %v203, %v202
    %v215 = vpack.c.b16 %v205, %v204
    %v216 = vpack.c.b16 %v207, %v206
    %v217 = vpack.c.b16 %v209, %v208
    %v258 = vunpack.c.l.b16 %v50
    %v259 = vunpack.c.l.b16 %v51
    %v260 = vunpack.c.l.b16 %v52
    %v261 = vunpack.c.l.b16 %v53
    %v262 = vunpack.c.l.b16 %v54
    %v263 = vunpack.c.l.b16 %v55
    %v264 = vunpack.c.l.b16 %v56
    %v265 = vunpack.c.l.b16 %v57
    %v266 = vunpack.c.l.b16 %v58
    %v267 = vunpack.c.l.b16 %v59
    %v268 = vunpack.c.l.b16 %v60
    %v269 = vunpack.c.l.b16 %v61
    %v270 = vunpack.c.l.b16 %v62
    %v271 = vunpack.c.l.b16 %v63
    %v272 = vunpack.c.l.b16 %v64
    %v273 = vunpack.c.l.b16 %v65
    %v274 = vunpack.c.l.b16 %v66
    %v275 = vunpack.c.l.b16 %v67
    %v276 = vunpack.c.l.b16 %v68
    %v277 = vunpack.c.l.b16 %v69
    %v278 = vunpack.c.l.b16 %v70
    %v279 = vunpack.c.l.b16 %v71
    %v280 = vunpack.c.l.b16 %v72
    %v281 = vunpack.c.l.b16 %v73
    %v282 = vunpack.c.l.b16 %v74
    %v283 = vunpack.c.l.b16 %v75
    %v284 = vunpack.c.l.b16 %v76
    %v285 = vunpack.c.l.b16 %v77
    %v286 = vunpack.c.l.b16 %v78
    %v287 = vunpack.c.l.b16 %v79
    %v288 = vunpack.c.l.b16 %v80
    %v289 = vunpack.c.l.b16 %v81
    %v290 = vpack.c.b16 %v259, %v258
    %v291 = vpack.c.b16 %v261, %v260
    %v292 = vpack.c.b16 %v263, %v262
    %v293 = vpack.c.b16 %v265, %v264
    %v294 = vpack.c.b16 %v267, %v266
    %v295 = vpack.c.b16 %v269, %v268
    %v296 = vpack.c.b16 %v271, %v270
    %v297 = vpack.c.b16 %v273, %v272
    %v298 = vpack.c.b16 %v275, %v274
    %v299 = vpack.c.b16 %v277, %v276
    %v300 = vpack.c.b16 %v279, %v278
    %v301 = vpack.c.b16 %v281, %v280
    %v302 = vpack.c.b16 %v283, %v282
    %v303 = vpack.c.b16 %v285, %v284
    %v304 = vpack.c.b16 %v287, %v286
    %v305 = vpack.c.b16 %v289, %v288
    %322 = vmatprep.subr.bf16.mxu0 0
    %323 = vmatpush1.bf16.xpose.msra.mxu0 %v290
    %324 = vmatprep.subr.bf16.mxu0 0
    %325 = vmatpush1.bf16.xpose.msra.mxu0 %v291
    %326 = vmatprep.subr.bf16.mxu0 0
    %327 = vmatpush1.bf16.xpose.msra.mxu0 %v292
    %328 = vmatprep.subr.bf16.mxu0 0
    %329 = vmatpush1.bf16.xpose.msra.mxu0 %v293
    %330 = vmatprep.subr.bf16.mxu0 0
    %331 = vmatpush1.bf16.xpose.msra.mxu0 %v294
    %332 = vmatprep.subr.bf16.mxu0 0
    %333 = vmatpush1.bf16.xpose.msra.mxu0 %v295
    %334 = vmatprep.subr.bf16.mxu0 0
    %335 = vmatpush1.bf16.xpose.msra.mxu0 %v296
    %336 = vmatprep.subr.bf16.mxu0 0
    %337 = vmatpush1.bf16.xpose.msra.mxu0 %v297
    %338 = vmatprep.subr.bf16.mxu0 0
    %339 = vmatpush1.bf16.xpose.msra.mxu0 %v298
    %340 = vmatprep.subr.bf16.mxu0 0
    %341 = vmatpush1.bf16.xpose.msra.mxu0 %v299
    %342 = vmatprep.subr.bf16.mxu0 0
    %343 = vmatpush1.bf16.xpose.msra.mxu0 %v300
    %344 = vmatprep.subr.bf16.mxu0 0
    %345 = vmatpush1.bf16.xpose.msra.mxu0 %v301
    %346 = vmatprep.subr.bf16.mxu0 0
    %347 = vmatpush1.bf16.xpose.msra.mxu0 %v302
    %348 = vmatprep.subr.bf16.mxu0 0
    %349 = vmatpush1.bf16.xpose.msra.mxu0 %v303
    %350 = vmatprep.subr.bf16.mxu0 0
    %351 = vmatpush1.bf16.xpose.msra.mxu0 %v304
    %352 = vmatprep.subr.bf16.mxu0 0
    %353 = vmatpush1.bf16.xpose.msra.mxu0 %v305
    %354 = vmatprep.mubr.bf16.mxu0 0
    %355 = vmatmul.mubr.bf16.gmra.mrb[0].mxu0 %v210
    %v356 = vpop.f32.mrb[0].mxu0
    %v357 = vadd.f32 %v101, %v356
    %v358 = vpop.f32.mrb[0].mxu0
    %v359 = vadd.f32 %v101, %v358
    %v360 = vpop.f32.mrb[0].mxu0
    %v361 = vadd.f32 %v106, %v360
    %v362 = vpop.f32.mrb[0].mxu0
    %v363 = vadd.f32 %v106, %v362
    %364 = vmatprep.mubr.bf16.mxu0 0
    %365 = vmatmul.mubr.bf16.gmra.mrb[0].mxu0 %v211
    %v366 = vpop.f32.mrb[0].mxu0
    %v367 = vadd.f32 %v111, %v366
    %v368 = vpop.f32.mrb[0].mxu0
    %v369 = vadd.f32 %v111, %v368
    %v370 = vpop.f32.mrb[0].mxu0
    %v371 = vadd.f32 %v116, %v370
    %v372 = vpop.f32.mrb[0].mxu0
    %v373 = vadd.f32 %v116, %v372
    %374 = vmatprep.mubr.bf16.mxu0 0
    %375 = vmatmul.mubr.bf16.gmra.mrb[0].mxu0 %v212
    %v376 = vpop.f32.mrb[0].mxu0
    %v377 = vadd.f32 %v121, %v376
    %v378 = vpop.f32.mrb[0].mxu0
    %v379 = vadd.f32 %v121, %v378
    %v380 = vpop.f32.mrb[0].mxu0
    %v381 = vadd.f32 %v126, %v380
    %v382 = vpop.f32.mrb[0].mxu0
    %v383 = vadd.f32 %v126, %v382
    %384 = vmatprep.mubr.bf16.mxu0 0
    %385 = vmatmul.mubr.bf16.gmra.mrb[0].mxu0 %v213
    %v386 = vpop.f32.mrb[0].mxu0
    %v387 = vadd.f32 %v131, %v386
    %v388 = vpop.f32.mrb[0].mxu0
    %v389 = vadd.f32 %v131, %v388
    %v390 = vpop.f32.mrb[0].mxu0
    %v391 = vadd.f32 %v136, %v390
    %v392 = vpop.f32.mrb[0].mxu0
    %v393 = vadd.f32 %v136, %v392
    %394 = vmatprep.mubr.bf16.mxu0 0
    %395 = vmatmul.mubr.bf16.gmra.mrb[0].mxu0 %v214
    %v396 = vpop.f32.mrb[0].mxu0
    %v397 = vadd.f32 %v141, %v396
    %v398 = vpop.f32.mrb[0].mxu0
    %v399 = vadd.f32 %v141, %v398
    %v400 = vpop.f32.mrb[0].mxu0
    %v401 = vadd.f32 %v146, %v400
    %v402 = vpop.f32.mrb[0].mxu0
    %v403 = vadd.f32 %v146, %v402
    %404 = vmatprep.mubr.bf16.mxu0 0
    %405 = vmatmul.mubr.bf16.gmra.mrb[0].mxu0 %v215
    %v406 = vpop.f32.mrb[0].mxu0
    %v407 = vadd.f32 %v151, %v406
    %v408 = vpop.f32.mrb[0].mxu0
    %v409 = vadd.f32 %v151, %v408
    %v410 = vpop.f32.mrb[0].mxu0
    %v411 = vadd.f32 %v156, %v410
    %v412 = vpop.f32.mrb[0].mxu0
    %v413 = vadd.f32 %v156, %v412
    %414 = vmatprep.mubr.bf16.mxu0 0
    %415 = vmatmul.mubr.bf16.gmra.mrb[0].mxu0 %v216
    %v416 = vpop.f32.mrb[0].mxu0
    %v417 = vadd.f32 %v161, %v416
    %v418 = vpop.f32.mrb[0].mxu0
    %v419 = vadd.f32 %v161, %v418
    %v420 = vpop.f32.mrb[0].mxu0
    %v421 = vadd.f32 %v166, %v420
    %v422 = vpop.f32.mrb[0].mxu0
    %v423 = vadd.f32 %v166, %v422
    %424 = vmatprep.mubr.bf16.mxu0 0
    %425 = vmatmul.mubr.bf16.gmra.mrb[0].mxu0 %v217
    %v426 = vpop.f32.mrb[0].mxu0
    %v427 = vadd.f32 %v171, %v426
    %v428 = vpop.f32.mrb[0].mxu0
    %v429 = vadd.f32 %v171, %v428
    %v430 = vpop.f32.mrb[0].mxu0
    %v431 = vadd.f32 %v176, %v430
    %v432 = vpop.f32.mrb[0].mxu0
    %v433 = vadd.f32 %v176, %v432
    %434 = vdwg.mxu0
    %v435 = vmax.f32 %v357, 0.0
    %v436 = vmax.f32 %v359, 0.0
    %v437 = vmax.f32 %v361, 0.0
    %v438 = vmax.f32 %v363, 0.0
    %v439 = vmax.f32 %v367, 0.0
    %v440 = vmax.f32 %v369, 0.0
    %v441 = vmax.f32 %v371, 0.0
    %v442 = vmax.f32 %v373, 0.0
    %v443 = vmax.f32 %v377, 0.0
    %v444 = vmax.f32 %v379, 0.0
    %v445 = vmax.f32 %v381, 0.0
    %v446 = vmax.f32 %v383, 0.0
    %v447 = vmax.f32 %v387, 0.0
    %v448 = vmax.f32 %v389, 0.0
    %v449 = vmax.f32 %v391, 0.0
    %v450 = vmax.f32 %v393, 0.0
    %v451 = vmax.f32 %v397, 0.0
    %v452 = vmax.f32 %v399, 0.0
    %v453 = vmax.f32 %v401, 0.0
    %v454 = vmax.f32 %v403, 0.0
    %v455 = vmax.f32 %v407, 0.0
    %v456 = vmax.f32 %v409, 0.0
    %v457 = vmax.f32 %v411, 0.0
    %v458 = vmax.f32 %v413, 0.0
    %v459 = vmax.f32 %v417, 0.0
    %v460 = vmax.f32 %v419, 0.0
    %v461 = vmax.f32 %v421, 0.0
    %v462 = vmax.f32 %v423, 0.0
    %v463 = vmax.f32 %v427, 0.0
    %v464 = vmax.f32 %v429, 0.0
    %v465 = vmax.f32 %v431, 0.0
    %v466 = vmax.f32 %v433, 0.0
    %v467 = vld [vmem:[%s3] sm:$0xf]
    %v468 = vld [vmem:[%s3 + $0x4] sm:$0xf]
    %v469 = vld [vmem:[%s3 + $0x8] sm:$0xf]
    %v470 = vld [vmem:[%s3 + $0xc] sm:$0xf]
    %v471 = vld [vmem:[%s3 + $0x10] sm:$0xf]
    %v472 = vld [vmem:[%s3 + $0x14] sm:$0xf]
    %v473 = vld [vmem:[%s3 + $0x18] sm:$0xf]
    %v474 = vld [vmem:[%s3 + $0x1c] sm:$0xf]
    %v475 = vld [vmem:[%s3 + $0x20] sm:$0xf]
    %v476 = vld [vmem:[%s3 + $0x24] sm:$0xf]
    %v477 = vld [vmem:[%s3 + $0x28] sm:$0xf]
    %v478 = vld [vmem:[%s3 + $0x2c] sm:$0xf]
    %v479 = vld [vmem:[%s3 + $0x30] sm:$0xf]
    %v480 = vld [vmem:[%s3 + $0x34] sm:$0xf]
    %v481 = vld [vmem:[%s3 + $0x38] sm:$0xf]
    %v482 = vld [vmem:[%s3 + $0x3c] sm:$0xf]
    %v483 = vpack.c.bf16 %v437, %v435
    %v484 = vpack.c.bf16 %v438, %v436
    %v485 = vpack.c.bf16 %v441, %v439
    %v486 = vpack.c.bf16 %v442, %v440
    %v487 = vpack.c.bf16 %v445, %v443
    %v488 = vpack.c.bf16 %v446, %v444
    %v489 = vpack.c.bf16 %v449, %v447
    %v490 = vpack.c.bf16 %v450, %v448
    %v491 = vpack.c.bf16 %v453, %v451
    %v492 = vpack.c.bf16 %v454, %v452
    %v493 = vpack.c.bf16 %v457, %v455
    %v494 = vpack.c.bf16 %v458, %v456
    %v495 = vpack.c.bf16 %v461, %v459
    %v496 = vpack.c.bf16 %v462, %v460
    %v497 = vpack.c.bf16 %v465, %v463
    %v498 = vpack.c.bf16 %v466, %v464
    %v499 = vld [vmem:[%s4] sm:$0xff]
    %v500 = vld [vmem:[%s4 + $0x8] sm:$0xff]
    %v501 = vld [vmem:[%s4 + $0x10] sm:$0xff]
    %v502 = vld [vmem:[%s4 + $0x18] sm:$0xff]
    %v503 = vld [vmem:[%s4 + $0x20] sm:$0xff]
    %v504 = vld [vmem:[%s4 + $0x28] sm:$0xff]
    %v505 = vld [vmem:[%s4 + $0x30] sm:$0xff]
    %v506 = vld [vmem:[%s4 + $0x38] sm:$0xff]
    %v507 = vld [vmem:[%s4 + $0x40] sm:$0xff]
    %v508 = vld [vmem:[%s4 + $0x48] sm:$0xff]
    %v509 = vld [vmem:[%s4 + $0x50] sm:$0xff]
    %v510 = vld [vmem:[%s4 + $0x58] sm:$0xff]
    %v511 = vld [vmem:[%s4 + $0x60] sm:$0xff]
    %v512 = vld [vmem:[%s4 + $0x68] sm:$0xff]
    %v513 = vld [vmem:[%s4 + $0x70] sm:$0xff]
    %v514 = vld [vmem:[%s4 + $0x78] sm:$0xff]
    %516 = vset.pattern.permute.xlu0 0
    %517 = vperm.xlu0 %516, %v499
    %v518 = vpop.permute.xlu0 %517
    %521 = vset.pattern.permute.xlu0 0
    %522 = vperm.xlu0 %521, %v500
    %v523 = vpop.permute.xlu0 %522
    %526 = vset.pattern.permute.xlu0 0
    %527 = vperm.xlu0 %526, %v501
    %v528 = vpop.permute.xlu0 %527
    %531 = vset.pattern.permute.xlu0 0
    %532 = vperm.xlu0 %531, %v502
    %v533 = vpop.permute.xlu0 %532
    %536 = vset.pattern.permute.xlu0 0
    %537 = vperm.xlu0 %536, %v503
    %v538 = vpop.permute.xlu0 %537
    %541 = vset.pattern.permute.xlu0 0
    %542 = vperm.xlu0 %541, %v504
    %v543 = vpop.permute.xlu0 %542
    %546 = vset.pattern.permute.xlu0 0
    %547 = vperm.xlu0 %546, %v505
    %v548 = vpop.permute.xlu0 %547
    %551 = vset.pattern.permute.xlu0 0
    %552 = vperm.xlu0 %551, %v506
    %v553 = vpop.permute.xlu0 %552
    %556 = vset.pattern.permute.xlu0 0
    %557 = vperm.xlu0 %556, %v507
    %v558 = vpop.permute.xlu0 %557
    %561 = vset.pattern.permute.xlu0 0
    %562 = vperm.xlu0 %561, %v508
    %v563 = vpop.permute.xlu0 %562
    %566 = vset.pattern.permute.xlu0 0
    %567 = vperm.xlu0 %566, %v509
    %v568 = vpop.permute.xlu0 %567
    %571 = vset.pattern.permute.xlu0 0
    %572 = vperm.xlu0 %571, %v510
    %v573 = vpop.permute.xlu0 %572
    %576 = vset.pattern.permute.xlu0 0
    %577 = vperm.xlu0 %576, %v511
    %v578 = vpop.permute.xlu0 %577
    %581 = vset.pattern.permute.xlu0 0
    %582 = vperm.xlu0 %581, %v512
    %v583 = vpop.permute.xlu0 %582
    %586 = vset.pattern.permute.xlu0 0
    %587 = vperm.xlu0 %586, %v513
    %v588 = vpop.permute.xlu0 %587
    %591 = vset.pattern.permute.xlu0 0
    %592 = vperm.xlu0 %591, %v514
    %v593 = vpop.permute.xlu0 %592
    %v611 = vunpack.c.l.b16 %v467
    %v612 = vunpack.c.l.b16 %v468
    %v613 = vunpack.c.l.b16 %v469
    %v614 = vunpack.c.l.b16 %v470
    %v615 = vunpack.c.l.b16 %v471
    %v616 = vunpack.c.l.b16 %v472
    %v617 = vunpack.c.l.b16 %v473
    %v618 = vunpack.c.l.b16 %v474
    %v619 = vunpack.c.l.b16 %v475
    %v620 = vunpack.c.l.b16 %v476
    %v621 = vunpack.c.l.b16 %v477
    %v622 = vunpack.c.l.b16 %v478
    %v623 = vunpack.c.l.b16 %v479
    %v624 = vunpack.c.l.b16 %v480
    %v625 = vunpack.c.l.b16 %v481
    %v626 = vunpack.c.l.b16 %v482
    %v627 = vpack.c.b16 %v612, %v611
    %v628 = vpack.c.b16 %v614, %v613
    %v629 = vpack.c.b16 %v616, %v615
    %v630 = vpack.c.b16 %v618, %v617
    %v631 = vpack.c.b16 %v620, %v619
    %v632 = vpack.c.b16 %v622, %v621
    %v633 = vpack.c.b16 %v624, %v623
    %v634 = vpack.c.b16 %v626, %v625
    %643 = vmatprep.subr.bf16.mxu0 %v484
    %644 = vmatpush1.bf16.msra.mxu0 %v483
    %645 = vmatprep.subr.bf16.mxu0 %v486
    %646 = vmatpush1.bf16.msra.mxu0 %v485
    %647 = vmatprep.subr.bf16.mxu0 %v488
    %648 = vmatpush1.bf16.msra.mxu0 %v487
    %649 = vmatprep.subr.bf16.mxu0 %v490
    %650 = vmatpush1.bf16.msra.mxu0 %v489
    %651 = vmatprep.subr.bf16.mxu0 %v492
    %652 = vmatpush1.bf16.msra.mxu0 %v491
    %653 = vmatprep.subr.bf16.mxu0 %v494
    %654 = vmatpush1.bf16.msra.mxu0 %v493
    %655 = vmatprep.subr.bf16.mxu0 %v496
    %656 = vmatpush1.bf16.msra.mxu0 %v495
    %657 = vmatprep.subr.bf16.mxu0 %v498
    %658 = vmatpush1.bf16.msra.mxu0 %v497
    %659 = vmatprep.subr.bf16.mxu0 0
    %660 = vmatpush1.bf16.msra.mxu0 0
    %661 = vmatprep.subr.bf16.mxu0 0
    %662 = vmatpush1.bf16.msra.mxu0 0
    %663 = vmatprep.subr.bf16.mxu0 0
    %664 = vmatpush1.bf16.msra.mxu0 0
    %665 = vmatprep.subr.bf16.mxu0 0
    %666 = vmatpush1.bf16.msra.mxu0 0
    %667 = vmatprep.subr.bf16.mxu0 0
    %668 = vmatpush1.bf16.msra.mxu0 0
    %669 = vmatprep.subr.bf16.mxu0 0
    %670 = vmatpush1.bf16.msra.mxu0 0
    %671 = vmatprep.subr.bf16.mxu0 0
    %672 = vmatpush1.bf16.msra.mxu0 0
    %673 = vmatprep.subr.bf16.mxu0 0
    %674 = vmatpush1.bf16.msra.mxu0 0
    %675 = vmatprep.mubr.bf16.mxu0 0
    %676 = vmatmul.mubr.bf16.gmra.mrb[0].mxu0 %v627
    %v677 = vpop.f32.mrb[0].mxu0
    %v678 = vadd.f32 %v518, %v677
    %v679 = vpop.f32.mrb[0].mxu0
    %v680 = vadd.f32 %v518, %v679
    %v681 = vpop.f32.mrb[0].mxu0
    %v682 = vadd.f32 %v523, %v681
    %v683 = vpop.f32.mrb[0].mxu0
    %v684 = vadd.f32 %v523, %v683
    %685 = vmatprep.mubr.bf16.mxu0 0
    %686 = vmatmul.mubr.bf16.gmra.mrb[0].mxu0 %v628
    %v687 = vpop.f32.mrb[0].mxu0
    %v688 = vadd.f32 %v528, %v687
    %v689 = vpop.f32.mrb[0].mxu0
    %v690 = vadd.f32 %v528, %v689
    %v691 = vpop.f32.mrb[0].mxu0
    %v692 = vadd.f32 %v533, %v691
    %v693 = vpop.f32.mrb[0].mxu0
    %v694 = vadd.f32 %v533, %v693
    %695 = vmatprep.mubr.bf16.mxu0 0
    %696 = vmatmul.mubr.bf16.gmra.mrb[0].mxu0 %v629
    %v697 = vpop.f32.mrb[0].mxu0
    %v698 = vadd.f32 %v538, %v697
    %v699 = vpop.f32.mrb[0].mxu0
    %v700 = vadd.f32 %v538, %v699
    %v701 = vpop.f32.mrb[0].mxu0
    %v702 = vadd.f32 %v543, %v701
    %v703 = vpop.f32.mrb[0].mxu0
    %v704 = vadd.f32 %v543, %v703
    %705 = vmatprep.mubr.bf16.mxu0 0
    %706 = vmatmul.mubr.bf16.gmra.mrb[0].mxu0 %v630
    %v707 = vpop.f32.mrb[0].mxu0
    %v708 = vadd.f32 %v548, %v707
    %v709 = vpop.f32.mrb[0].mxu0
    %v710 = vadd.f32 %v548, %v709
    %v711 = vpop.f32.mrb[0].mxu0
    %v712 = vadd.f32 %v553, %v711
    %v713 = vpop.f32.mrb[0].mxu0
    %v714 = vadd.f32 %v553, %v713
    %715 = vmatprep.mubr.bf16.mxu0 0
    %716 = vmatmul.mubr.bf16.gmra.mrb[0].mxu0 %v631
    %v717 = vpop.f32.mrb[0].mxu0
    %v718 = vadd.f32 %v558, %v717
    %v719 = vpop.f32.mrb[0].mxu0
    %v720 = vadd.f32 %v558, %v719
    %v721 = vpop.f32.mrb[0].mxu0
    %v722 = vadd.f32 %v563, %v721
    %v723 = vpop.f32.mrb[0].mxu0
    %v724 = vadd.f32 %v563, %v723
    %725 = vmatprep.mubr.bf16.mxu0 0
    %726 = vmatmul.mubr.bf16.gmra.mrb[0].mxu0 %v632
    %v727 = vpop.f32.mrb[0].mxu0
    %v728 = vadd.f32 %v568, %v727
    %v729 = vpop.f32.mrb[0].mxu0
    %v730 = vadd.f32 %v568, %v729
    %v731 = vpop.f32.mrb[0].mxu0
    %v732 = vadd.f32 %v573, %v731
    %v733 = vpop.f32.mrb[0].mxu0
    %v734 = vadd.f32 %v573, %v733
    %735 = vmatprep.mubr.bf16.mxu0 0
    %736 = vmatmul.mubr.bf16.gmra.mrb[0].mxu0 %v633
    %v737 = vpop.f32.mrb[0].mxu0
    %v738 = vadd.f32 %v578, %v737
    %v739 = vpop.f32.mrb[0].mxu0
    %v740 = vadd.f32 %v578, %v739
    %v741 = vpop.f32.mrb[0].mxu0
    %v742 = vadd.f32 %v583, %v741
    %v743 = vpop.f32.mrb[0].mxu0
    %v744 = vadd.f32 %v583, %v743
    %745 = vmatprep.mubr.bf16.mxu0 0
    %746 = vmatmul.mubr.bf16.gmra.mrb[0].mxu0 %v634
    %v747 = vpop.f32.mrb[0].mxu0
    %v748 = vadd.f32 %v588, %v747
    %v749 = vpop.f32.mrb[0].mxu0
    %v750 = vadd.f32 %v588, %v749
    %v751 = vpop.f32.mrb[0].mxu0
    %v752 = vadd.f32 %v593, %v751
    %v753 = vpop.f32.mrb[0].mxu0
    %v754 = vadd.f32 %v593, %v753
    %755 = vdwg.mxu0
    %v756 = vmax.f32 %v678, 0.0
    %v757 = vmax.f32 %v680, 0.0
    %v758 = vmax.f32 %v682, 0.0
    %v759 = vmax.f32 %v684, 0.0
    %v760 = vmax.f32 %v688, 0.0
    %v761 = vmax.f32 %v690, 0.0
    %v762 = vmax.f32 %v692, 0.0
    %v763 = vmax.f32 %v694, 0.0
    %v764 = vmax.f32 %v698, 0.0
    %v765 = vmax.f32 %v700, 0.0
    %v766 = vmax.f32 %v702, 0.0
    %v767 = vmax.f32 %v704, 0.0
    %v768 = vmax.f32 %v708, 0.0
    %v769 = vmax.f32 %v710, 0.0
    %v770 = vmax.f32 %v712, 0.0
    %v771 = vmax.f32 %v714, 0.0
    %v772 = vmax.f32 %v718, 0.0
    %v773 = vmax.f32 %v720, 0.0
    %v774 = vmax.f32 %v722, 0.0
    %v775 = vmax.f32 %v724, 0.0
    %v776 = vmax.f32 %v728, 0.0
    %v777 = vmax.f32 %v730, 0.0
    %v778 = vmax.f32 %v732, 0.0
    %v779 = vmax.f32 %v734, 0.0
    %v780 = vmax.f32 %v738, 0.0
    %v781 = vmax.f32 %v740, 0.0
    %v782 = vmax.f32 %v742, 0.0
    %v783 = vmax.f32 %v744, 0.0
    %v784 = vmax.f32 %v748, 0.0
    %v785 = vmax.f32 %v750, 0.0
    %v786 = vmax.f32 %v752, 0.0
    %v787 = vmax.f32 %v754, 0.0
    %v788 = vld [vmem:[%s5] sm:$0xf]
    %v789 = vld [vmem:[%s5 + $0x4] sm:$0xf]
    %v790 = vld [vmem:[%s5 + $0x8] sm:$0xf]
    %v791 = vld [vmem:[%s5 + $0xc] sm:$0xf]
    %v792 = vld [vmem:[%s5 + $0x10] sm:$0xf]
    %v793 = vld [vmem:[%s5 + $0x14] sm:$0xf]
    %v794 = vld [vmem:[%s5 + $0x18] sm:$0xf]
    %v795 = vld [vmem:[%s5 + $0x1c] sm:$0xf]
    %v796 = vld [vmem:[%s5 + $0x20] sm:$0xf]
    %v797 = vld [vmem:[%s5 + $0x24] sm:$0xf]
    %v798 = vld [vmem:[%s5 + $0x28] sm:$0xf]
    %v799 = vld [vmem:[%s5 + $0x2c] sm:$0xf]
    %v800 = vld [vmem:[%s5 + $0x30] sm:$0xf]
    %v801 = vld [vmem:[%s5 + $0x34] sm:$0xf]
    %v802 = vld [vmem:[%s5 + $0x38] sm:$0xf]
    %v803 = vld [vmem:[%s5 + $0x3c] sm:$0xf]
    %v804 = vpack.c.bf16 %v758, %v756
    %v805 = vpack.c.bf16 %v759, %v757
    %v806 = vpack.c.bf16 %v762, %v760
    %v807 = vpack.c.bf16 %v763, %v761
    %v808 = vpack.c.bf16 %v766, %v764
    %v809 = vpack.c.bf16 %v767, %v765
    %v810 = vpack.c.bf16 %v770, %v768
    %v811 = vpack.c.bf16 %v771, %v769
    %v812 = vpack.c.bf16 %v774, %v772
    %v813 = vpack.c.bf16 %v775, %v773
    %v814 = vpack.c.bf16 %v778, %v776
    %v815 = vpack.c.bf16 %v779, %v777
    %v816 = vpack.c.bf16 %v782, %v780
    %v817 = vpack.c.bf16 %v783, %v781
    %v818 = vpack.c.bf16 %v786, %v784
    %v819 = vpack.c.bf16 %v787, %v785
    %v820 = vld [vmem:[%s6] sm:$0xff]
    %v821 = vld [vmem:[%s6 + $0x8] sm:$0xff]
    %v822 = vld [vmem:[%s6 + $0x10] sm:$0xff]
    %v823 = vld [vmem:[%s6 + $0x18] sm:$0xff]
    %v824 = vld [vmem:[%s6 + $0x20] sm:$0xff]
    %v825 = vld [vmem:[%s6 + $0x28] sm:$0xff]
    %v826 = vld [vmem:[%s6 + $0x30] sm:$0xff]
    %v827 = vld [vmem:[%s6 + $0x38] sm:$0xff]
    %v828 = vld [vmem:[%s6 + $0x40] sm:$0xff]
    %v829 = vld [vmem:[%s6 + $0x48] sm:$0xff]
    %v830 = vld [vmem:[%s6 + $0x50] sm:$0xff]
    %v831 = vld [vmem:[%s6 + $0x58] sm:$0xff]
    %v832 = vld [vmem:[%s6 + $0x60] sm:$0xff]
    %v833 = vld [vmem:[%s6 + $0x68] sm:$0xff]
    %v834 = vld [vmem:[%s6 + $0x70] sm:$0xff]
    %v835 = vld [vmem:[%s6 + $0x78] sm:$0xff]
    %837 = vset.pattern.permute.xlu0 0
    %838 = vperm.xlu0 %837, %v820
    %v839 = vpop.permute.xlu0 %838
    %842 = vset.pattern.permute.xlu0 0
    %843 = vperm.xlu0 %842, %v821
    %v844 = vpop.permute.xlu0 %843
    %847 = vset.pattern.permute.xlu0 0
    %848 = vperm.xlu0 %847, %v822
    %v849 = vpop.permute.xlu0 %848
    %852 = vset.pattern.permute.xlu0 0
    %853 = vperm.xlu0 %852, %v823
    %v854 = vpop.permute.xlu0 %853
    %857 = vset.pattern.permute.xlu0 0
    %858 = vperm.xlu0 %857, %v824
    %v859 = vpop.permute.xlu0 %858
    %862 = vset.pattern.permute.xlu0 0
    %863 = vperm.xlu0 %862, %v825
    %v864 = vpop.permute.xlu0 %863
    %867 = vset.pattern.permute.xlu0 0
    %868 = vperm.xlu0 %867, %v826
    %v869 = vpop.permute.xlu0 %868
    %872 = vset.pattern.permute.xlu0 0
    %873 = vperm.xlu0 %872, %v827
    %v874 = vpop.permute.xlu0 %873
    %877 = vset.pattern.permute.xlu0 0
    %878 = vperm.xlu0 %877, %v828
    %v879 = vpop.permute.xlu0 %878
    %882 = vset.pattern.permute.xlu0 0
    %883 = vperm.xlu0 %882, %v829
    %v884 = vpop.permute.xlu0 %883
    %887 = vset.pattern.permute.xlu0 0
    %888 = vperm.xlu0 %887, %v830
    %v889 = vpop.permute.xlu0 %888
    %892 = vset.pattern.permute.xlu0 0
    %893 = vperm.xlu0 %892, %v831
    %v894 = vpop.permute.xlu0 %893
    %897 = vset.pattern.permute.xlu0 0
    %898 = vperm.xlu0 %897, %v832
    %v899 = vpop.permute.xlu0 %898
    %902 = vset.pattern.permute.xlu0 0
    %903 = vperm.xlu0 %902, %v833
    %v904 = vpop.permute.xlu0 %903
    %907 = vset.pattern.permute.xlu0 0
    %908 = vperm.xlu0 %907, %v834
    %v909 = vpop.permute.xlu0 %908
    %912 = vset.pattern.permute.xlu0 0
    %913 = vperm.xlu0 %912, %v835
    %v914 = vpop.permute.xlu0 %913
    %v932 = vunpack.c.l.b16 %v788
    %v933 = vunpack.c.l.b16 %v789
    %v934 = vunpack.c.l.b16 %v790
    %v935 = vunpack.c.l.b16 %v791
    %v936 = vunpack.c.l.b16 %v792
    %v937 = vunpack.c.l.b16 %v793
    %v938 = vunpack.c.l.b16 %v794
    %v939 = vunpack.c.l.b16 %v795
    %v940 = vunpack.c.l.b16 %v796
    %v941 = vunpack.c.l.b16 %v797
    %v942 = vunpack.c.l.b16 %v798
    %v943 = vunpack.c.l.b16 %v799
    %v944 = vunpack.c.l.b16 %v800
    %v945 = vunpack.c.l.b16 %v801
    %v946 = vunpack.c.l.b16 %v802
    %v947 = vunpack.c.l.b16 %v803
    %v948 = vpack.c.b16 %v933, %v932
    %v949 = vpack.c.b16 %v935, %v934
    %v950 = vpack.c.b16 %v937, %v936
    %v951 = vpack.c.b16 %v939, %v938
    %v952 = vpack.c.b16 %v941, %v940
    %v953 = vpack.c.b16 %v943, %v942
    %v954 = vpack.c.b16 %v945, %v944
    %v955 = vpack.c.b16 %v947, %v946
    %964 = vmatprep.subr.bf16.mxu0 %v805
    %965 = vmatpush1.bf16.msra.mxu0 %v804
    %966 = vmatprep.subr.bf16.mxu0 %v807
    %967 = vmatpush1.bf16.msra.mxu0 %v806
    %968 = vmatprep.subr.bf16.mxu0 %v809
    %969 = vmatpush1.bf16.msra.mxu0 %v808
    %970 = vmatprep.subr.bf16.mxu0 %v811
    %971 = vmatpush1.bf16.msra.mxu0 %v810
    %972 = vmatprep.subr.bf16.mxu0 %v813
    %973 = vmatpush1.bf16.msra.mxu0 %v812
    %974 = vmatprep.subr.bf16.mxu0 %v815
    %975 = vmatpush1.bf16.msra.mxu0 %v814
    %976 = vmatprep.subr.bf16.mxu0 %v817
    %977 = vmatpush1.bf16.msra.mxu0 %v816
    %978 = vmatprep.subr.bf16.mxu0 %v819
    %979 = vmatpush1.bf16.msra.mxu0 %v818
    %980 = vmatprep.subr.bf16.mxu0 0
    %981 = vmatpush1.bf16.msra.mxu0 0
    %982 = vmatprep.subr.bf16.mxu0 0
    %983 = vmatpush1.bf16.msra.mxu0 0
    %984 = vmatprep.subr.bf16.mxu0 0
    %985 = vmatpush1.bf16.msra.mxu0 0
    %986 = vmatprep.subr.bf16.mxu0 0
    %987 = vmatpush1.bf16.msra.mxu0 0
    %988 = vmatprep.subr.bf16.mxu0 0
    %989 = vmatpush1.bf16.msra.mxu0 0
    %990 = vmatprep.subr.bf16.mxu0 0
    %991 = vmatpush1.bf16.msra.mxu0 0
    %992 = vmatprep.subr.bf16.mxu0 0
    %993 = vmatpush1.bf16.msra.mxu0 0
    %994 = vmatprep.subr.bf16.mxu0 0
    %995 = vmatpush1.bf16.msra.mxu0 0
    %996 = vmatprep.mubr.bf16.mxu0 0
    %997 = vmatmul.mubr.bf16.gmra.mrb[0].mxu0 %v948
    %v998 = vpop.f32.mrb[0].mxu0
    %v999 = vadd.f32 %v839, %v998
    %v1000 = vpop.f32.mrb[0].mxu0
    %v1001 = vadd.f32 %v839, %v1000
    %v1002 = vpop.f32.mrb[0].mxu0
    %v1003 = vadd.f32 %v844, %v1002
    %v1004 = vpop.f32.mrb[0].mxu0
    %v1005 = vadd.f32 %v844, %v1004
    %1006 = vmatprep.mubr.bf16.mxu0 0
    %1007 = vmatmul.mubr.bf16.gmra.mrb[0].mxu0 %v949
    %v1008 = vpop.f32.mrb[0].mxu0
    %v1009 = vadd.f32 %v849, %v1008
    %v1010 = vpop.f32.mrb[0].mxu0
    %v1011 = vadd.f32 %v849, %v1010
    %v1012 = vpop.f32.mrb[0].mxu0
    %v1013 = vadd.f32 %v854, %v1012
    %v1014 = vpop.f32.mrb[0].mxu0
    %v1015 = vadd.f32 %v854, %v1014
    %1016 = vmatprep.mubr.bf16.mxu0 0
    %1017 = vmatmul.mubr.bf16.gmra.mrb[0].mxu0 %v950
    %v1018 = vpop.f32.mrb[0].mxu0
    %v1019 = vadd.f32 %v859, %v1018
    %v1020 = vpop.f32.mrb[0].mxu0
    %v1021 = vadd.f32 %v859, %v1020
    %v1022 = vpop.f32.mrb[0].mxu0
    %v1023 = vadd.f32 %v864, %v1022
    %v1024 = vpop.f32.mrb[0].mxu0
    %v1025 = vadd.f32 %v864, %v1024
    %1026 = vmatprep.mubr.bf16.mxu0 0
    %1027 = vmatmul.mubr.bf16.gmra.mrb[0].mxu0 %v951
    %v1028 = vpop.f32.mrb[0].mxu0
    %v1029 = vadd.f32 %v869, %v1028
    %v1030 = vpop.f32.mrb[0].mxu0
    %v1031 = vadd.f32 %v869, %v1030
    %v1032 = vpop.f32.mrb[0].mxu0
    %v1033 = vadd.f32 %v874, %v1032
    %v1034 = vpop.f32.mrb[0].mxu0
    %v1035 = vadd.f32 %v874, %v1034
    %1036 = vmatprep.mubr.bf16.mxu0 0
    %1037 = vmatmul.mubr.bf16.gmra.mrb[0].mxu0 %v952
    %v1038 = vpop.f32.mrb[0].mxu0
    %v1039 = vadd.f32 %v879, %v1038
    %v1040 = vpop.f32.mrb[0].mxu0
    %v1041 = vadd.f32 %v879, %v1040
    %v1042 = vpop.f32.mrb[0].mxu0
    %v1043 = vadd.f32 %v884, %v1042
    %v1044 = vpop.f32.mrb[0].mxu0
    %v1045 = vadd.f32 %v884, %v1044
    %1046 = vmatprep.mubr.bf16.mxu0 0
    %1047 = vmatmul.mubr.bf16.gmra.mrb[0].mxu0 %v953
    %v1048 = vpop.f32.mrb[0].mxu0
    %v1049 = vadd.f32 %v889, %v1048
    %v1050 = vpop.f32.mrb[0].mxu0
    %v1051 = vadd.f32 %v889, %v1050
    %v1052 = vpop.f32.mrb[0].mxu0
    %v1053 = vadd.f32 %v894, %v1052
    %v1054 = vpop.f32.mrb[0].mxu0
    %v1055 = vadd.f32 %v894, %v1054
    %1056 = vmatprep.mubr.bf16.mxu0 0
    %1057 = vmatmul.mubr.bf16.gmra.mrb[0].mxu0 %v954
    %v1058 = vpop.f32.mrb[0].mxu0
    %v1059 = vadd.f32 %v899, %v1058
    %v1060 = vpop.f32.mrb[0].mxu0
    %v1061 = vadd.f32 %v899, %v1060
    %v1062 = vpop.f32.mrb[0].mxu0
    %v1063 = vadd.f32 %v904, %v1062
    %v1064 = vpop.f32.mrb[0].mxu0
    %v1065 = vadd.f32 %v904, %v1064
    %1066 = vmatprep.mubr.bf16.mxu0 0
    %1067 = vmatmul.mubr.bf16.gmra.mrb[0].mxu0 %v955
    %v1068 = vpop.f32.mrb[0].mxu0
    %v1069 = vadd.f32 %v909, %v1068
    %v1070 = vpop.f32.mrb[0].mxu0
    %v1071 = vadd.f32 %v909, %v1070
    %v1072 = vpop.f32.mrb[0].mxu0
    %v1073 = vadd.f32 %v914, %v1072
    %v1074 = vpop.f32.mrb[0].mxu0
    %v1075 = vadd.f32 %v914, %v1074
    %1076 = vdwg.mxu0
    %v1077 = vmax.f32 %v999, 0.0
    %v1078 = vmax.f32 %v1001, 0.0
    %v1079 = vmax.f32 %v1003, 0.0
    %v1080 = vmax.f32 %v1005, 0.0
    %v1081 = vmax.f32 %v1009, 0.0
    %v1082 = vmax.f32 %v1011, 0.0
    %v1083 = vmax.f32 %v1013, 0.0
    %v1084 = vmax.f32 %v1015, 0.0
    %v1085 = vmax.f32 %v1019, 0.0
    %v1086 = vmax.f32 %v1021, 0.0
    %v1087 = vmax.f32 %v1023, 0.0
    %v1088 = vmax.f32 %v1025, 0.0
    %v1089 = vmax.f32 %v1029, 0.0
    %v1090 = vmax.f32 %v1031, 0.0
    %v1091 = vmax.f32 %v1033, 0.0
    %v1092 = vmax.f32 %v1035, 0.0
    %v1093 = vmax.f32 %v1039, 0.0
    %v1094 = vmax.f32 %v1041, 0.0
    %v1095 = vmax.f32 %v1043, 0.0
    %v1096 = vmax.f32 %v1045, 0.0
    %v1097 = vmax.f32 %v1049, 0.0
    %v1098 = vmax.f32 %v1051, 0.0
    %v1099 = vmax.f32 %v1053, 0.0
    %v1100 = vmax.f32 %v1055, 0.0
    %v1101 = vmax.f32 %v1059, 0.0
    %v1102 = vmax.f32 %v1061, 0.0
    %v1103 = vmax.f32 %v1063, 0.0
    %v1104 = vmax.f32 %v1065, 0.0
    %v1105 = vmax.f32 %v1069, 0.0
    %v1106 = vmax.f32 %v1071, 0.0
    %v1107 = vmax.f32 %v1073, 0.0
    %v1108 = vmax.f32 %v1075, 0.0
    %v1109 = vld [vmem:[%s7] sm:$0xf]
    %v1110 = vpack.c.bf16 %v1079, %v1077
    %v1111 = vpack.c.bf16 %v1080, %v1078
    %v1112 = vpack.c.bf16 %v1083, %v1081
    %v1113 = vpack.c.bf16 %v1084, %v1082
    %v1114 = vpack.c.bf16 %v1087, %v1085
    %v1115 = vpack.c.bf16 %v1088, %v1086
    %v1116 = vpack.c.bf16 %v1091, %v1089
    %v1117 = vpack.c.bf16 %v1092, %v1090
    %v1118 = vpack.c.bf16 %v1095, %v1093
    %v1119 = vpack.c.bf16 %v1096, %v1094
    %v1120 = vpack.c.bf16 %v1099, %v1097
    %v1121 = vpack.c.bf16 %v1100, %v1098
    %v1122 = vpack.c.bf16 %v1103, %v1101
    %v1123 = vpack.c.bf16 %v1104, %v1102
    %v1124 = vpack.c.bf16 %v1107, %v1105
    %v1125 = vpack.c.bf16 %v1108, %v1106
    %v1126 = vld [vmem:[%s8] sm:$0xff]
    %1128 = vset.pattern.permute.xlu0 0
    %1129 = vperm.xlu0 %1128, %v1126
    %v1130 = vpop.permute.xlu0 %1129
    %1132 = vmatprep.subr.bf16.mxu0 %v1111
    %1133 = vmatpush1.bf16.msra.mxu0 %v1110
    %1134 = vmatprep.subr.bf16.mxu0 %v1113
    %1135 = vmatpush1.bf16.msra.mxu0 %v1112
    %1136 = vmatprep.subr.bf16.mxu0 %v1115
    %1137 = vmatpush1.bf16.msra.mxu0 %v1114
    %1138 = vmatprep.subr.bf16.mxu0 %v1117
    %1139 = vmatpush1.bf16.msra.mxu0 %v1116
    %1140 = vmatprep.subr.bf16.mxu0 %v1119
    %1141 = vmatpush1.bf16.msra.mxu0 %v1118
    %1142 = vmatprep.subr.bf16.mxu0 %v1121
    %1143 = vmatpush1.bf16.msra.mxu0 %v1120
    %1144 = vmatprep.subr.bf16.mxu0 %v1123
    %1145 = vmatpush1.bf16.msra.mxu0 %v1122
    %1146 = vmatprep.subr.bf16.mxu0 %v1125
    %1147 = vmatpush1.bf16.msra.mxu0 %v1124
    %1148 = vmatprep.subr.bf16.mxu0 0
    %1149 = vmatpush1.bf16.msra.mxu0 0
    %1150 = vmatprep.subr.bf16.mxu0 0
    %1151 = vmatpush1.bf16.msra.mxu0 0
    %1152 = vmatprep.subr.bf16.mxu0 0
    %1153 = vmatpush1.bf16.msra.mxu0 0
    %1154 = vmatprep.subr.bf16.mxu0 0
    %1155 = vmatpush1.bf16.msra.mxu0 0
    %1156 = vmatprep.subr.bf16.mxu0 0
    %1157 = vmatpush1.bf16.msra.mxu0 0
    %1158 = vmatprep.subr.bf16.mxu0 0
    %1159 = vmatpush1.bf16.msra.mxu0 0
    %1160 = vmatprep.subr.bf16.mxu0 0
    %1161 = vmatpush1.bf16.msra.mxu0 0
    %1162 = vmatprep.subr.bf16.mxu0 0
    %1163 = vmatpush1.bf16.msra.mxu0 0
    %1164 = vmatprep.mubr.bf16.mxu0 0
    %1165 = vmatmul.mubr.bf16.gmra.mrb[0].mxu0 %v1109
    %v1166 = vpop.f32.mrb[0].mxu0
    %v1167 = vadd.f32 %v1130, %v1166
    %v1168 = vpop.f32.mrb[0].mxu0
    %v1169 = vadd.f32 %v1130, %v1168
    %v1170 = vpop.f32.mrb[0].mxu0
    %v1171 = vpop.f32.mrb[0].mxu0
    %1172 = vdwg.mxu0
    %v1175 = vcombine.low %v1167, %v1169
    %v1177 = vunpack.c.l.s4 1966171168
    %v1178 = vunpack.c.0.s8 %v1177
    %v1179 = vlaneseq
    %v1180 = vshrl.u32 %v1179, 7
    %v1181 = vsub.s32 %v1178, %v1180
    %v1182 = vrot.slane %v1175, %v1181
    %v1184 = vunpack.c.l.s4 1966171168
    %v1185 = vunpack.c.0.s8 %v1184
    %v1186 = vlaneseq
    %v1187 = vshrl.u32 %v1186, 7
    %v1188 = vsub.s32 %v1185, %v1187
    %v1189 = vrot.slane %v1182, %v1188
    %v1191 = vlaneseq
    %vm1192 = vcmp.ge.s32.totalorder %v1191, 0
    %vm1193 = vcmp.lt.s32.totalorder %v1191, 256
    %vm1194 = vmand %vm1192, %vm1193
    %1195 = vst.msk [vmem:[#allocation2] sm:$0x3] %vm1194, %v1189
    // Predicated region
    $region38: #{tpu_custom_call.1} parent=1 // pred_check
      _
    $region39: #{tpu_custom_call.1} parent=1 // pred_check_branch
      %1197 = sbr.rel (0) target = $region41
    $region40: #{tpu_custom_call.1} parent=1 // pred_region
      %s1199 = ssub.s32 32, 32
      %1200 = vsyncadd [#allocation3], %s1199
      %s1202 = sshll.u32 [#allocation2], 4
      %s1203 = int_to_ptr.vmem [resolvable:$true] %s1202
      %1205 = dma.vmem_to_hbm [thread:$0]  %s1203, 32, %s9, [#allocation3]
    $region41: #{tpu_custom_call.1} parent=1 // pred_fallthru
      _
    // Predicated region
    $region42: #{tpu_custom_call.1} parent=1 // pred_check
      _
    $region43: #{tpu_custom_call.1} parent=1 // pred_check_branch
      %1207 = sbr.rel (0) target = $region45
    $region44: #{tpu_custom_call.1} parent=1 // pred_region
      %1208 = dma.done [#allocation3], 32
    $region45: #{tpu_custom_call.1} parent=1 // pred_fallthru
      _
    %1209 = vsyncpa [#allocation3], 1

// kernel: tpu_custom_call.1
$region0: #{tpu_custom_call.1}
  #allocation0 [shape = 'u32[]', space=smem, size = 0x4, offset = 0x4, fixed_abs, tag = 'smem constant byte address 0x4 - core index']
  #allocation1 [shape = 'u32[144,128]{1,0:T(1,128)}', space=vmem, size = 0x12000, scoped, tag = 'internal scratch']
  %s0 = inlined_call_operand.vmem [shape: bf16[256,128], index: 0, kind: input, shape index: {}]
  %s1 = inlined_call_operand.vmem [shape: bf16[128,128], index: 1, kind: input, shape index: {}]
  %s2 = inlined_call_operand.vmem [shape: f32[128,1], index: 2, kind: input, shape index: {}]
  %s3 = inlined_call_operand.vmem [shape: bf16[128,128], index: 3, kind: input, shape index: {}]
  %s4 = inlined_call_operand.vmem [shape: f32[128,1], index: 4, kind: input, shape index: {}]
  %s5 = inlined_call_operand.vmem [shape: bf16[128,128], index: 5, kind: input, shape index: {}]
  %s6 = inlined_call_operand.vmem [shape: f32[128,1], index: 6, kind: input, shape index: {}]
  %s7 = inlined_call_operand.vmem [shape: bf16[8,128], index: 7, kind: input, shape index: {}]
  %s8 = inlined_call_operand.vmem [shape: f32[8,1], index: 8, kind: input, shape index: {}]
  %s9 = inlined_call_operand.hbm [shape: f32[1,256], index: 9, kind: output, shape index: {}]
  %s10 = sld [smem:[#allocation0]]
  $region46: #{tpu_custom_call.1} parent=0
    _
  %s12 = ssub.s32 1, %s10
  %s13 = scalar_select 0, %s12, %s10
  $region1: #{tpu_custom_call.1} parent=0
    #allocation2 [shape = 'u8[1024]{0}', space=vmem, size = 0x400, scoped, tag = 'output window, operand 0, single buffered']
    #allocation3 [shape = 's32[1]{0}', space=sflag, size = 0x4, scoped, tag = 'scoped memory for tpu_custom_call.1']
    %14 = vsyncpa [#allocation3], 0
    // Predicated region
    $region2: #{tpu_custom_call.1} parent=1 // pred_check
      _
    $region3: #{tpu_custom_call.1} parent=1 // pred_check_branch
      %16 = sbr.rel (0) target = $region5
    $region4: #{tpu_custom_call.1} parent=1 // pred_region
      _
    $region5: #{tpu_custom_call.1} parent=1 // pred_fallthru
      _
    // Predicated region
    $region6: #{tpu_custom_call.1} parent=1 // pred_check
      _
    $region7: #{tpu_custom_call.1} parent=1 // pred_check_branch
      %18 = sbr.rel (0) target = $region9
    $region8: #{tpu_custom_call.1} parent=1 // pred_region
      _
    $region9: #{tpu_custom_call.1} parent=1 // pred_fallthru
      _
    // Predicated region
    $region10: #{tpu_custom_call.1} parent=1 // pred_check
      _
    $region11: #{tpu_custom_call.1} parent=1 // pred_check_branch
      %20 = sbr.rel (0) target = $region13
    $region12: #{tpu_custom_call.1} parent=1 // pred_region
      _
    $region13: #{tpu_custom_call.1} parent=1 // pred_fallthru
      _
    // Predicated region
    $region14: #{tpu_custom_call.1} parent=1 // pred_check
      _
    $region15: #{tpu_custom_call.1} parent=1 // pred_check_branch
      %22 = sbr.rel (0) target = $region17
    $region16: #{tpu_custom_call.1} parent=1 // pred_region
      _
    $region17: #{tpu_custom_call.1} parent=1 // pred_fallthru
      _
    // Predicated region
    $region18: #{tpu_custom_call.1} parent=1 // pred_check
      _
    $region19: #{tpu_custom_call.1} parent=1 // pred_check_branch
      %24 = sbr.rel (0) target = $region21
    $region20: #{tpu_custom_call.1} parent=1 // pred_region
      _
    $region21: #{tpu_custom_call.1} parent=1 // pred_fallthru
      _
    // Predicated region
    $region22: #{tpu_custom_call.1} parent=1 // pred_check
      _
    $region23: #{tpu_custom_call.1} parent=1 // pred_check_branch
      %26 = sbr.rel (0) target = $region25
    $region24: #{tpu_custom_call.1} parent=1 // pred_region
      _
    $region25: #{tpu_custom_call.1} parent=1 // pred_fallthru
      _
    // Predicated region
    $region26: #{tpu_custom_call.1} parent=1 // pred_check
      _
    $region27: #{tpu_custom_call.1} parent=1 // pred_check_branch
      %28 = sbr.rel (0) target = $region29
    $region28: #{tpu_custom_call.1} parent=1 // pred_region
      _
    $region29: #{tpu_custom_call.1} parent=1 // pred_fallthru
      _
    // Predicated region
    $region30: #{tpu_custom_call.1} parent=1 // pred_check
      _
    $region31: #{tpu_custom_call.1} parent=1 // pred_check_branch
      %30 = sbr.rel (0) target = $region33
    $region32: #{tpu_custom_call.1} parent=1 // pred_region
      _
    $region33: #{tpu_custom_call.1} parent=1 // pred_fallthru
      _
    // Predicated region
    $region34: #{tpu_custom_call.1} parent=1 // pred_check
      _
    $region35: #{tpu_custom_call.1} parent=1 // pred_check_branch
      %32 = sbr.rel (0) target = $region37
    $region36: #{tpu_custom_call.1} parent=1 // pred_region
      _
    $region37: #{tpu_custom_call.1} parent=1 // pred_fallthru
      _
    %v34 = vld [vmem:[%s1] sm:$0xf]
    %v35 = vld [vmem:[%s1 + $0x4] sm:$0xf]
    %v36 = vld [vmem:[%s1 + $0x8] sm:$0xf]
    %v37 = vld [vmem:[%s1 + $0xc] sm:$0xf]
    %v38 = vld [vmem:[%s1 + $0x10] sm:$0xf]
    %v39 = vld [vmem:[%s1 + $0x14] sm:$0xf]
    %v40 = vld [vmem:[%s1 + $0x18] sm:$0xf]
    %v41 = vld [vmem:[%s1 + $0x1c] sm:$0xf]
    %v42 = vld [vmem:[%s1 + $0x20] sm:$0xf]
    %v43 = vld [vmem:[%s1 + $0x24] sm:$0xf]
    %v44 = vld [vmem:[%s1 + $0x28] sm:$0xf]
    %v45 = vld [vmem:[%s1 + $0x2c] sm:$0xf]
    %v46 = vld [vmem:[%s1 + $0x30] sm:$0xf]
    %v47 = vld [vmem:[%s1 + $0x34] sm:$0xf]
    %v48 = vld [vmem:[%s1 + $0x38] sm:$0xf]
    %v49 = vld [vmem:[%s1 + $0x3c] sm:$0xf]
    %v50 = vld [vmem:[%s0] sm:$0xf]
    %v51 = vld [vmem:[%s0 + $0x4] sm:$0xf]
    %v52 = vld [vmem:[%s0 + $0x8] sm:$0xf]
    %v53 = vld [vmem:[%s0 + $0xc] sm:$0xf]
    %v54 = vld [vmem:[%s0 + $0x10] sm:$0xf]
    %v55 = vld [vmem:[%s0 + $0x14] sm:$0xf]
    %v56 = vld [vmem:[%s0 + $0x18] sm:$0xf]
    %v57 = vld [vmem:[%s0 + $0x1c] sm:$0xf]
    %v58 = vld [vmem:[%s0 + $0x20] sm:$0xf]
    %v59 = vld [vmem:[%s0 + $0x24] sm:$0xf]
    %v60 = vld [vmem:[%s0 + $0x28] sm:$0xf]
    %v61 = vld [vmem:[%s0 + $0x2c] sm:$0xf]
    %v62 = vld [vmem:[%s0 + $0x30] sm:$0xf]
    %v63 = vld [vmem:[%s0 + $0x34] sm:$0xf]
    %v64 = vld [vmem:[%s0 + $0x38] sm:$0xf]
    %v65 = vld [vmem:[%s0 + $0x3c] sm:$0xf]
    %v66 = vld [vmem:[%s0 + $0x40] sm:$0xf]
    %v67 = vld [vmem:[%s0 + $0x44] sm:$0xf]
    %v68 = vld [vmem:[%s0 + $0x48] sm:$0xf]
    %v69 = vld [vmem:[%s0 + $0x4c] sm:$0xf]
    %v70 = vld [vmem:[%s0 + $0x50] sm:$0xf]
    %v71 = vld [vmem:[%s0 + $0x54] sm:$0xf]
    %v72 = vld [vmem:[%s0 + $0x58] sm:$0xf]
    %v73 = vld [vmem:[%s0 + $0x5c] sm:$0xf]
    %v74 = vld [vmem:[%s0 + $0x60] sm:$0xf]
    %v75 = vld [vmem:[%s0 + $0x64] sm:$0xf]
    %v76 = vld [vmem:[%s0 + $0x68] sm:$0xf]
    %v77 = vld [vmem:[%s0 + $0x6c] sm:$0xf]
    %v78 = vld [vmem:[%s0 + $0x70] sm:$0xf]
    %v79 = vld [vmem:[%s0 + $0x74] sm:$0xf]
    %v80 = vld [vmem:[%s0 + $0x78] sm:$0xf]
    %v81 = vld [vmem:[%s0 + $0x7c] sm:$0xf]
    %v82 = vld [vmem:[%s2] sm:$0xff]
    %v83 = vld [vmem:[%s2 + $0x8] sm:$0xff]
    %v84 = vld [vmem:[%s2 + $0x10] sm:$0xff]
    %v85 = vld [vmem:[%s2 + $0x18] sm:$0xff]
    %v86 = vld [vmem:[%s2 + $0x20] sm:$0xff]
    %v87 = vld [vmem:[%s2 + $0x28] sm:$0xff]
    %v88 = vld [vmem:[%s2 + $0x30] sm:$0xff]
    %v89 = vld [vmem:[%s2 + $0x38] sm:$0xff]
    %v90 = vld [vmem:[%s2 + $0x40] sm:$0xff]
    %v91 = vld [vmem:[%s2 + $0x48] sm:$0xff]
    %v92 = vld [vmem:[%s2 + $0x50] sm:$0xff]
    %v93 = vld [vmem:[%s2 + $0x58] sm:$0xff]
    %v94 = vld [vmem:[%s2 + $0x60] sm:$0xff]
    %v95 = vld [vmem:[%s2 + $0x68] sm:$0xff]
    %v96 = vld [vmem:[%s2 + $0x70] sm:$0xff]
    %v97 = vld [vmem:[%s2 + $0x78] sm:$0xff]
    %99 = vset.pattern.permute.xlu0 0
    %100 = vperm.xlu0 %99, %v82
    %v101 = vpop.permute.xlu0 %100
    %104 = vset.pattern.permute.xlu0 0
    %105 = vperm.xlu0 %104, %v83
    %v106 = vpop.permute.xlu0 %105
    %109 = vset.pattern.permute.xlu0 0
    %110 = vperm.xlu0 %109, %v84
    %v111 = vpop.permute.xlu0 %110
    %114 = vset.pattern.permute.xlu0 0
    %115 = vperm.xlu0 %114, %v85
    %v116 = vpop.permute.xlu0 %115
    %119 = vset.pattern.permute.xlu0 0
    %120 = vperm.xlu0 %119, %v86
    %v121 = vpop.permute.xlu0 %120
    %124 = vset.pattern.permute.xlu0 0
    %125 = vperm.xlu0 %124, %v87
    %v126 = vpop.permute.xlu0 %125
    %129 = vset.pattern.permute.xlu0 0
    %130 = vperm.xlu0 %129, %v88
    %v131 = vpop.permute.xlu0 %130
    %134 = vset.pattern.permute.xlu0 0
    %135 = vperm.xlu0 %134, %v89
    %v136 = vpop.permute.xlu0 %135
    %139 = vset.pattern.permute.xlu0 0
    %140 = vperm.xlu0 %139, %v90
    %v141 = vpop.permute.xlu0 %140
    %144 = vset.pattern.permute.xlu0 0
    %145 = vperm.xlu0 %144, %v91
    %v146 = vpop.permute.xlu0 %145
    %149 = vset.pattern.permute.xlu0 0
    %150 = vperm.xlu0 %149, %v92
    %v151 = vpop.permute.xlu0 %150
    %154 = vset.pattern.permute.xlu0 0
    %155 = vperm.xlu0 %154, %v93
    %v156 = vpop.permute.xlu0 %155
    %159 = vset.pattern.permute.xlu0 0
    %160 = vperm.xlu0 %159, %v94
    %v161 = vpop.permute.xlu0 %160
    %164 = vset.pattern.permute.xlu0 0
    %165 = vperm.xlu0 %164, %v95
    %v166 = vpop.permute.xlu0 %165
    %169 = vset.pattern.permute.xlu0 0
    %170 = vperm.xlu0 %169, %v96
    %v171 = vpop.permute.xlu0 %170
    %174 = vset.pattern.permute.xlu0 0
    %175 = vperm.xlu0 %174, %v97
    %v176 = vpop.permute.xlu0 %175
    %v194 = vunpack.c.l.b16 %v34
    %v195 = vunpack.c.l.b16 %v35
    %v196 = vunpack.c.l.b16 %v36
    %v197 = vunpack.c.l.b16 %v37
    %v198 = vunpack.c.l.b16 %v38
    %v199 = vunpack.c.l.b16 %v39
    %v200 = vunpack.c.l.b16 %v40
    %v201 = vunpack.c.l.b16 %v41
    %v202 = vunpack.c.l.b16 %v42
    %v203 = vunpack.c.l.b16 %v43
    %v204 = vunpack.c.l.b16 %v44
    %v205 = vunpack.c.l.b16 %v45
    %v206 = vunpack.c.l.b16 %v46
    %v207 = vunpack.c.l.b16 %v47
    %v208 = vunpack.c.l.b16 %v48
    %v209 = vunpack.c.l.b16 %v49
    %v210 = vpack.c.b16 %v195, %v194
    %v211 = vpack.c.b16 %v197, %v196
    %v212 = vpack.c.b16 %v199, %v198
    %v213 = vpack.c.b16 %v201, %v200
    %v214 = vpack.c.b16 %v203, %v202
    %v215 = vpack.c.b16 %v205, %v204
    %v216 = vpack.c.b16 %v207, %v206
    %v217 = vpack.c.b16 %v209, %v208
    %v258 = vunpack.c.l.b16 %v50
    %v259 = vunpack.c.l.b16 %v51
    %v260 = vunpack.c.l.b16 %v52
    %v261 = vunpack.c.l.b16 %v53
    %v262 = vunpack.c.l.b16 %v54
    %v263 = vunpack.c.l.b16 %v55
    %v264 = vunpack.c.l.b16 %v56
    %v265 = vunpack.c.l.b16 %v57
    %v266 = vunpack.c.l.b16 %v58
    %v267 = vunpack.c.l.b16 %v59
    %v268 = vunpack.c.l.b16 %v60
    %v269 = vunpack.c.l.b16 %v61
    %v270 = vunpack.c.l.b16 %v62
    %v271 = vunpack.c.l.b16 %v63
    %v272 = vunpack.c.l.b16 %v64
    %v273 = vunpack.c.l.b16 %v65
    %v274 = vunpack.c.l.b16 %v66
    %v275 = vunpack.c.l.b16 %v67
    %v276 = vunpack.c.l.b16 %v68
    %v277 = vunpack.c.l.b16 %v69
    %v278 = vunpack.c.l.b16 %v70
    %v279 = vunpack.c.l.b16 %v71
    %v280 = vunpack.c.l.b16 %v72
    %v281 = vunpack.c.l.b16 %v73
    %v282 = vunpack.c.l.b16 %v74
    %v283 = vunpack.c.l.b16 %v75
    %v284 = vunpack.c.l.b16 %v76
    %v285 = vunpack.c.l.b16 %v77
    %v286 = vunpack.c.l.b16 %v78
    %v287 = vunpack.c.l.b16 %v79
    %v288 = vunpack.c.l.b16 %v80
    %v289 = vunpack.c.l.b16 %v81
    %v290 = vpack.c.b16 %v259, %v258
    %v291 = vpack.c.b16 %v261, %v260
    %v292 = vpack.c.b16 %v263, %v262
    %v293 = vpack.c.b16 %v265, %v264
    %v294 = vpack.c.b16 %v267, %v266
    %v295 = vpack.c.b16 %v269, %v268
    %v296 = vpack.c.b16 %v271, %v270
    %v297 = vpack.c.b16 %v273, %v272
    %v298 = vpack.c.b16 %v275, %v274
    %v299 = vpack.c.b16 %v277, %v276
    %v300 = vpack.c.b16 %v279, %v278
    %v301 = vpack.c.b16 %v281, %v280
    %v302 = vpack.c.b16 %v283, %v282
    %v303 = vpack.c.b16 %v285, %v284
    %v304 = vpack.c.b16 %v287, %v286
    %v305 = vpack.c.b16 %v289, %v288
    %322 = vmatprep.subr.bf16.mxu0 0
    %323 = vmatpush1.bf16.xpose.msra.mxu0 %v290
    %324 = vmatprep.subr.bf16.mxu0 0
    %325 = vmatpush1.bf16.xpose.msra.mxu0 %v291
    %326 = vmatprep.subr.bf16.mxu0 0
    %327 = vmatpush1.bf16.xpose.msra.mxu0 %v292
    %328 = vmatprep.subr.bf16.mxu0 0
    %329 = vmatpush1.bf16.xpose.msra.mxu0 %v293
    %330 = vmatprep.subr.bf16.mxu0 0
    %331 = vmatpush1.bf16.xpose.msra.mxu0 %v294
    %332 = vmatprep.subr.bf16.mxu0 0
    %333 = vmatpush1.bf16.xpose.msra.mxu0 %v295
    %334 = vmatprep.subr.bf16.mxu0 0
    %335 = vmatpush1.bf16.xpose.msra.mxu0 %v296
    %336 = vmatprep.subr.bf16.mxu0 0
    %337 = vmatpush1.bf16.xpose.msra.mxu0 %v297
    %338 = vmatprep.subr.bf16.mxu0 0
    %339 = vmatpush1.bf16.xpose.msra.mxu0 %v298
    %340 = vmatprep.subr.bf16.mxu0 0
    %341 = vmatpush1.bf16.xpose.msra.mxu0 %v299
    %342 = vmatprep.subr.bf16.mxu0 0
    %343 = vmatpush1.bf16.xpose.msra.mxu0 %v300
    %344 = vmatprep.subr.bf16.mxu0 0
    %345 = vmatpush1.bf16.xpose.msra.mxu0 %v301
    %346 = vmatprep.subr.bf16.mxu0 0
    %347 = vmatpush1.bf16.xpose.msra.mxu0 %v302
    %348 = vmatprep.subr.bf16.mxu0 0
    %349 = vmatpush1.bf16.xpose.msra.mxu0 %v303
    %350 = vmatprep.subr.bf16.mxu0 0
    %351 = vmatpush1.bf16.xpose.msra.mxu0 %v304
    %352 = vmatprep.subr.bf16.mxu0 0
    %353 = vmatpush1.bf16.xpose.msra.mxu0 %v305
    %354 = vmatprep.mubr.bf16.mxu0 0
    %355 = vmatmul.mubr.bf16.gmra.mrb[0].mxu0 %v210
    %v356 = vpop.f32.mrb[0].mxu0
    %v357 = vadd.f32 %v101, %v356
    %v358 = vpop.f32.mrb[0].mxu0
    %v359 = vadd.f32 %v101, %v358
    %v360 = vpop.f32.mrb[0].mxu0
    %v361 = vadd.f32 %v106, %v360
    %v362 = vpop.f32.mrb[0].mxu0
    %v363 = vadd.f32 %v106, %v362
    %364 = vmatprep.mubr.bf16.mxu0 0
    %365 = vmatmul.mubr.bf16.gmra.mrb[0].mxu0 %v211
    %v366 = vpop.f32.mrb[0].mxu0
    %v367 = vadd.f32 %v111, %v366
    %v368 = vpop.f32.mrb[0].mxu0
    %v369 = vadd.f32 %v111, %v368
    %v370 = vpop.f32.mrb[0].mxu0
    %v371 = vadd.f32 %v116, %v370
    %v372 = vpop.f32.mrb[0].mxu0
    %v373 = vadd.f32 %v116, %v372
    %374 = vmatprep.mubr.bf16.mxu0 0
    %375 = vmatmul.mubr.bf16.gmra.mrb[0].mxu0 %v212
    %v376 = vpop.f32.mrb[0].mxu0
    %v377 = vadd.f32 %v121, %v376
    %v378 = vpop.f32.mrb[0].mxu0
    %v379 = vadd.f32 %v121, %v378
    %v380 = vpop.f32.mrb[0].mxu0
    %v381 = vadd.f32 %v126, %v380
    %v382 = vpop.f32.mrb[0].mxu0
    %v383 = vadd.f32 %v126, %v382
    %384 = vmatprep.mubr.bf16.mxu0 0
    %385 = vmatmul.mubr.bf16.gmra.mrb[0].mxu0 %v213
    %v386 = vpop.f32.mrb[0].mxu0
    %v387 = vadd.f32 %v131, %v386
    %v388 = vpop.f32.mrb[0].mxu0
    %v389 = vadd.f32 %v131, %v388
    %v390 = vpop.f32.mrb[0].mxu0
    %v391 = vadd.f32 %v136, %v390
    %v392 = vpop.f32.mrb[0].mxu0
    %v393 = vadd.f32 %v136, %v392
    %394 = vmatprep.mubr.bf16.mxu0 0
    %395 = vmatmul.mubr.bf16.gmra.mrb[0].mxu0 %v214
    %v396 = vpop.f32.mrb[0].mxu0
    %v397 = vadd.f32 %v141, %v396
    %v398 = vpop.f32.mrb[0].mxu0
    %v399 = vadd.f32 %v141, %v398
    %v400 = vpop.f32.mrb[0].mxu0
    %v401 = vadd.f32 %v146, %v400
    %v402 = vpop.f32.mrb[0].mxu0
    %v403 = vadd.f32 %v146, %v402
    %404 = vmatprep.mubr.bf16.mxu0 0
    %405 = vmatmul.mubr.bf16.gmra.mrb[0].mxu0 %v215
    %v406 = vpop.f32.mrb[0].mxu0
    %v407 = vadd.f32 %v151, %v406
    %v408 = vpop.f32.mrb[0].mxu0
    %v409 = vadd.f32 %v151, %v408
    %v410 = vpop.f32.mrb[0].mxu0
    %v411 = vadd.f32 %v156, %v410
    %v412 = vpop.f32.mrb[0].mxu0
    %v413 = vadd.f32 %v156, %v412
    %414 = vmatprep.mubr.bf16.mxu0 0
    %415 = vmatmul.mubr.bf16.gmra.mrb[0].mxu0 %v216
    %v416 = vpop.f32.mrb[0].mxu0
    %v417 = vadd.f32 %v161, %v416
    %v418 = vpop.f32.mrb[0].mxu0
    %v419 = vadd.f32 %v161, %v418
    %v420 = vpop.f32.mrb[0].mxu0
    %v421 = vadd.f32 %v166, %v420
    %v422 = vpop.f32.mrb[0].mxu0
    %v423 = vadd.f32 %v166, %v422
    %424 = vmatprep.mubr.bf16.mxu0 0
    %425 = vmatmul.mubr.bf16.gmra.mrb[0].mxu0 %v217
    %v426 = vpop.f32.mrb[0].mxu0
    %v427 = vadd.f32 %v171, %v426
    %v428 = vpop.f32.mrb[0].mxu0
    %v429 = vadd.f32 %v171, %v428
    %v430 = vpop.f32.mrb[0].mxu0
    %v431 = vadd.f32 %v176, %v430
    %v432 = vpop.f32.mrb[0].mxu0
    %v433 = vadd.f32 %v176, %v432
    %434 = vdwg.mxu0
    %v435 = vmax.f32 %v357, 0.0
    %v436 = vmax.f32 %v359, 0.0
    %v437 = vmax.f32 %v361, 0.0
    %v438 = vmax.f32 %v363, 0.0
    %v439 = vmax.f32 %v367, 0.0
    %v440 = vmax.f32 %v369, 0.0
    %v441 = vmax.f32 %v371, 0.0
    %v442 = vmax.f32 %v373, 0.0
    %v443 = vmax.f32 %v377, 0.0
    %v444 = vmax.f32 %v379, 0.0
    %v445 = vmax.f32 %v381, 0.0
    %v446 = vmax.f32 %v383, 0.0
    %v447 = vmax.f32 %v387, 0.0
    %v448 = vmax.f32 %v389, 0.0
    %v449 = vmax.f32 %v391, 0.0
    %v450 = vmax.f32 %v393, 0.0
    %v451 = vmax.f32 %v397, 0.0
    %v452 = vmax.f32 %v399, 0.0
    %v453 = vmax.f32 %v401, 0.0
    %v454 = vmax.f32 %v403, 0.0
    %v455 = vmax.f32 %v407, 0.0
    %v456 = vmax.f32 %v409, 0.0
    %v457 = vmax.f32 %v411, 0.0
    %v458 = vmax.f32 %v413, 0.0
    %v459 = vmax.f32 %v417, 0.0
    %v460 = vmax.f32 %v419, 0.0
    %v461 = vmax.f32 %v421, 0.0
    %v462 = vmax.f32 %v423, 0.0
    %v463 = vmax.f32 %v427, 0.0
    %v464 = vmax.f32 %v429, 0.0
    %v465 = vmax.f32 %v431, 0.0
    %v466 = vmax.f32 %v433, 0.0
    %v467 = vld [vmem:[%s3] sm:$0xf]
    %v468 = vld [vmem:[%s3 + $0x4] sm:$0xf]
    %v469 = vld [vmem:[%s3 + $0x8] sm:$0xf]
    %v470 = vld [vmem:[%s3 + $0xc] sm:$0xf]
    %v471 = vld [vmem:[%s3 + $0x10] sm:$0xf]
    %v472 = vld [vmem:[%s3 + $0x14] sm:$0xf]
    %v473 = vld [vmem:[%s3 + $0x18] sm:$0xf]
    %v474 = vld [vmem:[%s3 + $0x1c] sm:$0xf]
    %v475 = vld [vmem:[%s3 + $0x20] sm:$0xf]
    %v476 = vld [vmem:[%s3 + $0x24] sm:$0xf]
    %v477 = vld [vmem:[%s3 + $0x28] sm:$0xf]
    %v478 = vld [vmem:[%s3 + $0x2c] sm:$0xf]
    %v479 = vld [vmem:[%s3 + $0x30] sm:$0xf]
    %v480 = vld [vmem:[%s3 + $0x34] sm:$0xf]
    %v481 = vld [vmem:[%s3 + $0x38] sm:$0xf]
    %v482 = vld [vmem:[%s3 + $0x3c] sm:$0xf]
    %v483 = vpack.c.bf16 %v437, %v435
    %v484 = vpack.c.bf16 %v438, %v436
    %v485 = vpack.c.bf16 %v441, %v439
    %v486 = vpack.c.bf16 %v442, %v440
    %v487 = vpack.c.bf16 %v445, %v443
    %v488 = vpack.c.bf16 %v446, %v444
    %v489 = vpack.c.bf16 %v449, %v447
    %v490 = vpack.c.bf16 %v450, %v448
    %v491 = vpack.c.bf16 %v453, %v451
    %v492 = vpack.c.bf16 %v454, %v452
    %v493 = vpack.c.bf16 %v457, %v455
    %v494 = vpack.c.bf16 %v458, %v456
    %v495 = vpack.c.bf16 %v461, %v459
    %v496 = vpack.c.bf16 %v462, %v460
    %v497 = vpack.c.bf16 %v465, %v463
    %v498 = vpack.c.bf16 %v466, %v464
    %v499 = vld [vmem:[%s4] sm:$0xff]
    %v500 = vld [vmem:[%s4 + $0x8] sm:$0xff]
    %v501 = vld [vmem:[%s4 + $0x10] sm:$0xff]
    %v502 = vld [vmem:[%s4 + $0x18] sm:$0xff]
    %v503 = vld [vmem:[%s4 + $0x20] sm:$0xff]
    %v504 = vld [vmem:[%s4 + $0x28] sm:$0xff]
    %v505 = vld [vmem:[%s4 + $0x30] sm:$0xff]
    %v506 = vld [vmem:[%s4 + $0x38] sm:$0xff]
    %v507 = vld [vmem:[%s4 + $0x40] sm:$0xff]
    %v508 = vld [vmem:[%s4 + $0x48] sm:$0xff]
    %v509 = vld [vmem:[%s4 + $0x50] sm:$0xff]
    %v510 = vld [vmem:[%s4 + $0x58] sm:$0xff]
    %v511 = vld [vmem:[%s4 + $0x60] sm:$0xff]
    %v512 = vld [vmem:[%s4 + $0x68] sm:$0xff]
    %v513 = vld [vmem:[%s4 + $0x70] sm:$0xff]
    %v514 = vld [vmem:[%s4 + $0x78] sm:$0xff]
    %516 = vset.pattern.permute.xlu0 0
    %517 = vperm.xlu0 %516, %v499
    %v518 = vpop.permute.xlu0 %517
    %521 = vset.pattern.permute.xlu0 0
    %522 = vperm.xlu0 %521, %v500
    %v523 = vpop.permute.xlu0 %522
    %526 = vset.pattern.permute.xlu0 0
    %527 = vperm.xlu0 %526, %v501
    %v528 = vpop.permute.xlu0 %527
    %531 = vset.pattern.permute.xlu0 0
    %532 = vperm.xlu0 %531, %v502
    %v533 = vpop.permute.xlu0 %532
    %536 = vset.pattern.permute.xlu0 0
    %537 = vperm.xlu0 %536, %v503
    %v538 = vpop.permute.xlu0 %537
    %541 = vset.pattern.permute.xlu0 0
    %542 = vperm.xlu0 %541, %v504
    %v543 = vpop.permute.xlu0 %542
    %546 = vset.pattern.permute.xlu0 0
    %547 = vperm.xlu0 %546, %v505
    %v548 = vpop.permute.xlu0 %547
    %551 = vset.pattern.permute.xlu0 0
    %552 = vperm.xlu0 %551, %v506
    %v553 = vpop.permute.xlu0 %552
    %556 = vset.pattern.permute.xlu0 0
    %557 = vperm.xlu0 %556, %v507
    %v558 = vpop.permute.xlu0 %557
    %561 = vset.pattern.permute.xlu0 0
    %562 = vperm.xlu0 %561, %v508
    %v563 = vpop.permute.xlu0 %562
    %566 = vset.pattern.permute.xlu0 0
    %567 = vperm.xlu0 %566, %v509
    %v568 = vpop.permute.xlu0 %567
    %571 = vset.pattern.permute.xlu0 0
    %572 = vperm.xlu0 %571, %v510
    %v573 = vpop.permute.xlu0 %572
    %576 = vset.pattern.permute.xlu0 0
    %577 = vperm.xlu0 %576, %v511
    %v578 = vpop.permute.xlu0 %577
    %581 = vset.pattern.permute.xlu0 0
    %582 = vperm.xlu0 %581, %v512
    %v583 = vpop.permute.xlu0 %582
    %586 = vset.pattern.permute.xlu0 0
    %587 = vperm.xlu0 %586, %v513
    %v588 = vpop.permute.xlu0 %587
    %591 = vset.pattern.permute.xlu0 0
    %592 = vperm.xlu0 %591, %v514
    %v593 = vpop.permute.xlu0 %592
    %v611 = vunpack.c.l.b16 %v467
    %v612 = vunpack.c.l.b16 %v468
    %v613 = vunpack.c.l.b16 %v469
    %v614 = vunpack.c.l.b16 %v470
    %v615 = vunpack.c.l.b16 %v471
    %v616 = vunpack.c.l.b16 %v472
    %v617 = vunpack.c.l.b16 %v473
    %v618 = vunpack.c.l.b16 %v474
    %v619 = vunpack.c.l.b16 %v475
    %v620 = vunpack.c.l.b16 %v476
    %v621 = vunpack.c.l.b16 %v477
    %v622 = vunpack.c.l.b16 %v478
    %v623 = vunpack.c.l.b16 %v479
    %v624 = vunpack.c.l.b16 %v480
    %v625 = vunpack.c.l.b16 %v481
    %v626 = vunpack.c.l.b16 %v482
    %v627 = vpack.c.b16 %v612, %v611
    %v628 = vpack.c.b16 %v614, %v613
    %v629 = vpack.c.b16 %v616, %v615
    %v630 = vpack.c.b16 %v618, %v617
    %v631 = vpack.c.b16 %v620, %v619
    %v632 = vpack.c.b16 %v622, %v621
    %v633 = vpack.c.b16 %v624, %v623
    %v634 = vpack.c.b16 %v626, %v625
    %643 = vmatprep.subr.bf16.mxu0 %v484
    %644 = vmatpush1.bf16.msra.mxu0 %v483
    %645 = vmatprep.subr.bf16.mxu0 %v486
    %646 = vmatpush1.bf16.msra.mxu0 %v485
    %647 = vmatprep.subr.bf16.mxu0 %v488
    %648 = vmatpush1.bf16.msra.mxu0 %v487
    %649 = vmatprep.subr.bf16.mxu0 %v490
    %650 = vmatpush1.bf16.msra.mxu0 %v489
    %651 = vmatprep.subr.bf16.mxu0 %v492
    %652 = vmatpush1.bf16.msra.mxu0 %v491
    %653 = vmatprep.subr.bf16.mxu0 %v494
    %654 = vmatpush1.bf16.msra.mxu0 %v493
    %655 = vmatprep.subr.bf16.mxu0 %v496
    %656 = vmatpush1.bf16.msra.mxu0 %v495
    %657 = vmatprep.subr.bf16.mxu0 %v498
    %658 = vmatpush1.bf16.msra.mxu0 %v497
    %659 = vmatprep.subr.bf16.mxu0 0
    %660 = vmatpush1.bf16.msra.mxu0 0
    %661 = vmatprep.subr.bf16.mxu0 0
    %662 = vmatpush1.bf16.msra.mxu0 0
    %663 = vmatprep.subr.bf16.mxu0 0
    %664 = vmatpush1.bf16.msra.mxu0 0
    %665 = vmatprep.subr.bf16.mxu0 0
    %666 = vmatpush1.bf16.msra.mxu0 0
    %667 = vmatprep.subr.bf16.mxu0 0
    %668 = vmatpush1.bf16.msra.mxu0 0
    %669 = vmatprep.subr.bf16.mxu0 0
    %670 = vmatpush1.bf16.msra.mxu0 0
    %671 = vmatprep.subr.bf16.mxu0 0
    %672 = vmatpush1.bf16.msra.mxu0 0
    %673 = vmatprep.subr.bf16.mxu0 0
    %674 = vmatpush1.bf16.msra.mxu0 0
    %675 = vmatprep.mubr.bf16.mxu0 0
    %676 = vmatmul.mubr.bf16.gmra.mrb[0].mxu0 %v627
    %v677 = vpop.f32.mrb[0].mxu0
    %v678 = vadd.f32 %v518, %v677
    %v679 = vpop.f32.mrb[0].mxu0
    %v680 = vadd.f32 %v518, %v679
    %v681 = vpop.f32.mrb[0].mxu0
    %v682 = vadd.f32 %v523, %v681
    %v683 = vpop.f32.mrb[0].mxu0
    %v684 = vadd.f32 %v523, %v683
    %685 = vmatprep.mubr.bf16.mxu0 0
    %686 = vmatmul.mubr.bf16.gmra.mrb[0].mxu0 %v628
    %v687 = vpop.f32.mrb[0].mxu0
    %v688 = vadd.f32 %v528, %v687
    %v689 = vpop.f32.mrb[0].mxu0
    %v690 = vadd.f32 %v528, %v689
    %v691 = vpop.f32.mrb[0].mxu0
    %v692 = vadd.f32 %v533, %v691
    %v693 = vpop.f32.mrb[0].mxu0
    %v694 = vadd.f32 %v533, %v693
    %695 = vmatprep.mubr.bf16.mxu0 0
    %696 = vmatmul.mubr.bf16.gmra.mrb[0].mxu0 %v629
    %v697 = vpop.f32.mrb[0].mxu0
    %v698 = vadd.f32 %v538, %v697
    %v699 = vpop.f32.mrb[0].mxu0
    %v700 = vadd.f32 %v538, %v699
    %v701 = vpop.f32.mrb[0].mxu0
    %v702 = vadd.f32 %v543, %v701
    %v703 = vpop.f32.mrb[0].mxu0
    %v704 = vadd.f32 %v543, %v703
    %705 = vmatprep.mubr.bf16.mxu0 0
    %706 = vmatmul.mubr.bf16.gmra.mrb[0].mxu0 %v630
    %v707 = vpop.f32.mrb[0].mxu0
    %v708 = vadd.f32 %v548, %v707
    %v709 = vpop.f32.mrb[0].mxu0
    %v710 = vadd.f32 %v548, %v709
    %v711 = vpop.f32.mrb[0].mxu0
    %v712 = vadd.f32 %v553, %v711
    %v713 = vpop.f32.mrb[0].mxu0
    %v714 = vadd.f32 %v553, %v713
    %715 = vmatprep.mubr.bf16.mxu0 0
    %716 = vmatmul.mubr.bf16.gmra.mrb[0].mxu0 %v631
    %v717 = vpop.f32.mrb[0].mxu0
    %v718 = vadd.f32 %v558, %v717
    %v719 = vpop.f32.mrb[0].mxu0
    %v720 = vadd.f32 %v558, %v719
    %v721 = vpop.f32.mrb[0].mxu0
    %v722 = vadd.f32 %v563, %v721
    %v723 = vpop.f32.mrb[0].mxu0
    %v724 = vadd.f32 %v563, %v723
    %725 = vmatprep.mubr.bf16.mxu0 0
    %726 = vmatmul.mubr.bf16.gmra.mrb[0].mxu0 %v632
    %v727 = vpop.f32.mrb[0].mxu0
    %v728 = vadd.f32 %v568, %v727
    %v729 = vpop.f32.mrb[0].mxu0
    %v730 = vadd.f32 %v568, %v729
    %v731 = vpop.f32.mrb[0].mxu0
    %v732 = vadd.f32 %v573, %v731
    %v733 = vpop.f32.mrb[0].mxu0
    %v734 = vadd.f32 %v573, %v733
    %735 = vmatprep.mubr.bf16.mxu0 0
    %736 = vmatmul.mubr.bf16.gmra.mrb[0].mxu0 %v633
    %v737 = vpop.f32.mrb[0].mxu0
    %v738 = vadd.f32 %v578, %v737
    %v739 = vpop.f32.mrb[0].mxu0
    %v740 = vadd.f32 %v578, %v739
    %v741 = vpop.f32.mrb[0].mxu0
    %v742 = vadd.f32 %v583, %v741
    %v743 = vpop.f32.mrb[0].mxu0
    %v744 = vadd.f32 %v583, %v743
    %745 = vmatprep.mubr.bf16.mxu0 0
    %746 = vmatmul.mubr.bf16.gmra.mrb[0].mxu0 %v634
    %v747 = vpop.f32.mrb[0].mxu0
    %v748 = vadd.f32 %v588, %v747
    %v749 = vpop.f32.mrb[0].mxu0
    %v750 = vadd.f32 %v588, %v749
    %v751 = vpop.f32.mrb[0].mxu0
    %v752 = vadd.f32 %v593, %v751
    %v753 = vpop.f32.mrb[0].mxu0
    %v754 = vadd.f32 %v593, %v753
    %755 = vdwg.mxu0
    %v756 = vmax.f32 %v678, 0.0
    %v757 = vmax.f32 %v680, 0.0
    %v758 = vmax.f32 %v682, 0.0
    %v759 = vmax.f32 %v684, 0.0
    %v760 = vmax.f32 %v688, 0.0
    %v761 = vmax.f32 %v690, 0.0
    %v762 = vmax.f32 %v692, 0.0
    %v763 = vmax.f32 %v694, 0.0
    %v764 = vmax.f32 %v698, 0.0
    %v765 = vmax.f32 %v700, 0.0
    %v766 = vmax.f32 %v702, 0.0
    %v767 = vmax.f32 %v704, 0.0
    %v768 = vmax.f32 %v708, 0.0
    %v769 = vmax.f32 %v710, 0.0
    %v770 = vmax.f32 %v712, 0.0
    %v771 = vmax.f32 %v714, 0.0
    %v772 = vmax.f32 %v718, 0.0
    %v773 = vmax.f32 %v720, 0.0
    %v774 = vmax.f32 %v722, 0.0
    %v775 = vmax.f32 %v724, 0.0
    %v776 = vmax.f32 %v728, 0.0
    %v777 = vmax.f32 %v730, 0.0
    %v778 = vmax.f32 %v732, 0.0
    %v779 = vmax.f32 %v734, 0.0
    %v780 = vmax.f32 %v738, 0.0
    %v781 = vmax.f32 %v740, 0.0
    %v782 = vmax.f32 %v742, 0.0
    %v783 = vmax.f32 %v744, 0.0
    %v784 = vmax.f32 %v748, 0.0
    %v785 = vmax.f32 %v750, 0.0
    %v786 = vmax.f32 %v752, 0.0
    %v787 = vmax.f32 %v754, 0.0
    %v788 = vld [vmem:[%s5] sm:$0xf]
    %v789 = vld [vmem:[%s5 + $0x4] sm:$0xf]
    %v790 = vld [vmem:[%s5 + $0x8] sm:$0xf]
    %v791 = vld [vmem:[%s5 + $0xc] sm:$0xf]
    %v792 = vld [vmem:[%s5 + $0x10] sm:$0xf]
    %v793 = vld [vmem:[%s5 + $0x14] sm:$0xf]
    %v794 = vld [vmem:[%s5 + $0x18] sm:$0xf]
    %v795 = vld [vmem:[%s5 + $0x1c] sm:$0xf]
    %v796 = vld [vmem:[%s5 + $0x20] sm:$0xf]
    %v797 = vld [vmem:[%s5 + $0x24] sm:$0xf]
    %v798 = vld [vmem:[%s5 + $0x28] sm:$0xf]
    %v799 = vld [vmem:[%s5 + $0x2c] sm:$0xf]
    %v800 = vld [vmem:[%s5 + $0x30] sm:$0xf]
    %v801 = vld [vmem:[%s5 + $0x34] sm:$0xf]
    %v802 = vld [vmem:[%s5 + $0x38] sm:$0xf]
    %v803 = vld [vmem:[%s5 + $0x3c] sm:$0xf]
    %v804 = vpack.c.bf16 %v758, %v756
    %v805 = vpack.c.bf16 %v759, %v757
    %v806 = vpack.c.bf16 %v762, %v760
    %v807 = vpack.c.bf16 %v763, %v761
    %v808 = vpack.c.bf16 %v766, %v764
    %v809 = vpack.c.bf16 %v767, %v765
    %v810 = vpack.c.bf16 %v770, %v768
    %v811 = vpack.c.bf16 %v771, %v769
    %v812 = vpack.c.bf16 %v774, %v772
    %v813 = vpack.c.bf16 %v775, %v773
    %v814 = vpack.c.bf16 %v778, %v776
    %v815 = vpack.c.bf16 %v779, %v777
    %v816 = vpack.c.bf16 %v782, %v780
    %v817 = vpack.c.bf16 %v783, %v781
    %v818 = vpack.c.bf16 %v786, %v784
    %v819 = vpack.c.bf16 %v787, %v785
    %v820 = vld [vmem:[%s6] sm:$0xff]
    %v821 = vld [vmem:[%s6 + $0x8] sm:$0xff]
    %v822 = vld [vmem:[%s6 + $0x10] sm:$0xff]
    %v823 = vld [vmem:[%s6 + $0x18] sm:$0xff]
    %v824 = vld [vmem:[%s6 + $0x20] sm:$0xff]
    %v825 = vld [vmem:[%s6 + $0x28] sm:$0xff]
    %v826 = vld [vmem:[%s6 + $0x30] sm:$0xff]
    %v827 = vld [vmem:[%s6 + $0x38] sm:$0xff]
    %v828 = vld [vmem:[%s6 + $0x40] sm:$0xff]
    %v829 = vld [vmem:[%s6 + $0x48] sm:$0xff]
    %v830 = vld [vmem:[%s6 + $0x50] sm:$0xff]
    %v831 = vld [vmem:[%s6 + $0x58] sm:$0xff]
    %v832 = vld [vmem:[%s6 + $0x60] sm:$0xff]
    %v833 = vld [vmem:[%s6 + $0x68] sm:$0xff]
    %v834 = vld [vmem:[%s6 + $0x70] sm:$0xff]
    %v835 = vld [vmem:[%s6 + $0x78] sm:$0xff]
    %837 = vset.pattern.permute.xlu0 0
    %838 = vperm.xlu0 %837, %v820
    %v839 = vpop.permute.xlu0 %838
    %842 = vset.pattern.permute.xlu0 0
    %843 = vperm.xlu0 %842, %v821
    %v844 = vpop.permute.xlu0 %843
    %847 = vset.pattern.permute.xlu0 0
    %848 = vperm.xlu0 %847, %v822
    %v849 = vpop.permute.xlu0 %848
    %852 = vset.pattern.permute.xlu0 0
    %853 = vperm.xlu0 %852, %v823
    %v854 = vpop.permute.xlu0 %853
    %857 = vset.pattern.permute.xlu0 0
    %858 = vperm.xlu0 %857, %v824
    %v859 = vpop.permute.xlu0 %858
    %862 = vset.pattern.permute.xlu0 0
    %863 = vperm.xlu0 %862, %v825
    %v864 = vpop.permute.xlu0 %863
    %867 = vset.pattern.permute.xlu0 0
    %868 = vperm.xlu0 %867, %v826
    %v869 = vpop.permute.xlu0 %868
    %872 = vset.pattern.permute.xlu0 0
    %873 = vperm.xlu0 %872, %v827
    %v874 = vpop.permute.xlu0 %873
    %877 = vset.pattern.permute.xlu0 0
    %878 = vperm.xlu0 %877, %v828
    %v879 = vpop.permute.xlu0 %878
    %882 = vset.pattern.permute.xlu0 0
    %883 = vperm.xlu0 %882, %v829
    %v884 = vpop.permute.xlu0 %883
    %887 = vset.pattern.permute.xlu0 0
    %888 = vperm.xlu0 %887, %v830
    %v889 = vpop.permute.xlu0 %888
    %892 = vset.pattern.permute.xlu0 0
    %893 = vperm.xlu0 %892, %v831
    %v894 = vpop.permute.xlu0 %893
    %897 = vset.pattern.permute.xlu0 0
    %898 = vperm.xlu0 %897, %v832
    %v899 = vpop.permute.xlu0 %898
    %902 = vset.pattern.permute.xlu0 0
    %903 = vperm.xlu0 %902, %v833
    %v904 = vpop.permute.xlu0 %903
    %907 = vset.pattern.permute.xlu0 0
    %908 = vperm.xlu0 %907, %v834
    %v909 = vpop.permute.xlu0 %908
    %912 = vset.pattern.permute.xlu0 0
    %913 = vperm.xlu0 %912, %v835
    %v914 = vpop.permute.xlu0 %913
    %v932 = vunpack.c.l.b16 %v788
    %v933 = vunpack.c.l.b16 %v789
    %v934 = vunpack.c.l.b16 %v790
    %v935 = vunpack.c.l.b16 %v791
    %v936 = vunpack.c.l.b16 %v792
    %v937 = vunpack.c.l.b16 %v793
    %v938 = vunpack.c.l.b16 %v794
    %v939 = vunpack.c.l.b16 %v795
    %v940 = vunpack.c.l.b16 %v796
    %v941 = vunpack.c.l.b16 %v797
    %v942 = vunpack.c.l.b16 %v798
    %v943 = vunpack.c.l.b16 %v799
    %v944 = vunpack.c.l.b16 %v800
    %v945 = vunpack.c.l.b16 %v801
    %v946 = vunpack.c.l.b16 %v802
    %v947 = vunpack.c.l.b16 %v803
    %v948 = vpack.c.b16 %v933, %v932
    %v949 = vpack.c.b16 %v935, %v934
    %v950 = vpack.c.b16 %v937, %v936
    %v951 = vpack.c.b16 %v939, %v938
    %v952 = vpack.c.b16 %v941, %v940
    %v953 = vpack.c.b16 %v943, %v942
    %v954 = vpack.c.b16 %v945, %v944
    %v955 = vpack.c.b16 %v947, %v946
    %964 = vmatprep.subr.bf16.mxu0 %v805
    %965 = vmatpush1.bf16.msra.mxu0 %v804
    %966 = vmatprep.subr.bf16.mxu0 %v807
    %967 = vmatpush1.bf16.msra.mxu0 %v806
    %968 = vmatprep.subr.bf16.mxu0 %v809
    %969 = vmatpush1.bf16.msra.mxu0 %v808
    %970 = vmatprep.subr.bf16.mxu0 %v811
    %971 = vmatpush1.bf16.msra.mxu0 %v810
    %972 = vmatprep.subr.bf16.mxu0 %v813
    %973 = vmatpush1.bf16.msra.mxu0 %v812
    %974 = vmatprep.subr.bf16.mxu0 %v815
    %975 = vmatpush1.bf16.msra.mxu0 %v814
    %976 = vmatprep.subr.bf16.mxu0 %v817
    %977 = vmatpush1.bf16.msra.mxu0 %v816
    %978 = vmatprep.subr.bf16.mxu0 %v819
    %979 = vmatpush1.bf16.msra.mxu0 %v818
    %980 = vmatprep.subr.bf16.mxu0 0
    %981 = vmatpush1.bf16.msra.mxu0 0
    %982 = vmatprep.subr.bf16.mxu0 0
    %983 = vmatpush1.bf16.msra.mxu0 0
    %984 = vmatprep.subr.bf16.mxu0 0
    %985 = vmatpush1.bf16.msra.mxu0 0
    %986 = vmatprep.subr.bf16.mxu0 0
    %987 = vmatpush1.bf16.msra.mxu0 0
    %988 = vmatprep.subr.bf16.mxu0 0
    %989 = vmatpush1.bf16.msra.mxu0 0
    %990 = vmatprep.subr.bf16.mxu0 0
    %991 = vmatpush1.bf16.msra.mxu0 0
    %992 = vmatprep.subr.bf16.mxu0 0
    %993 = vmatpush1.bf16.msra.mxu0 0
    %994 = vmatprep.subr.bf16.mxu0 0
    %995 = vmatpush1.bf16.msra.mxu0 0
    %996 = vmatprep.mubr.bf16.mxu0 0
    %997 = vmatmul.mubr.bf16.gmra.mrb[0].mxu0 %v948
    %v998 = vpop.f32.mrb[0].mxu0
    %v999 = vadd.f32 %v839, %v998
    %v1000 = vpop.f32.mrb[0].mxu0
    %v1001 = vadd.f32 %v839, %v1000
    %v1002 = vpop.f32.mrb[0].mxu0
    %v1003 = vadd.f32 %v844, %v1002
    %v1004 = vpop.f32.mrb[0].mxu0
    %v1005 = vadd.f32 %v844, %v1004
    %1006 = vmatprep.mubr.bf16.mxu0 0
    %1007 = vmatmul.mubr.bf16.gmra.mrb[0].mxu0 %v949
    %v1008 = vpop.f32.mrb[0].mxu0
    %v1009 = vadd.f32 %v849, %v1008
    %v1010 = vpop.f32.mrb[0].mxu0
    %v1011 = vadd.f32 %v849, %v1010
    %v1012 = vpop.f32.mrb[0].mxu0
    %v1013 = vadd.f32 %v854, %v1012
    %v1014 = vpop.f32.mrb[0].mxu0
    %v1015 = vadd.f32 %v854, %v1014
    %1016 = vmatprep.mubr.bf16.mxu0 0
    %1017 = vmatmul.mubr.bf16.gmra.mrb[0].mxu0 %v950
    %v1018 = vpop.f32.mrb[0].mxu0
    %v1019 = vadd.f32 %v859, %v1018
    %v1020 = vpop.f32.mrb[0].mxu0
    %v1021 = vadd.f32 %v859, %v1020
    %v1022 = vpop.f32.mrb[0].mxu0
    %v1023 = vadd.f32 %v864, %v1022
    %v1024 = vpop.f32.mrb[0].mxu0
    %v1025 = vadd.f32 %v864, %v1024
    %1026 = vmatprep.mubr.bf16.mxu0 0
    %1027 = vmatmul.mubr.bf16.gmra.mrb[0].mxu0 %v951
    %v1028 = vpop.f32.mrb[0].mxu0
    %v1029 = vadd.f32 %v869, %v1028
    %v1030 = vpop.f32.mrb[0].mxu0
    %v1031 = vadd.f32 %v869, %v1030
    %v1032 = vpop.f32.mrb[0].mxu0
    %v1033 = vadd.f32 %v874, %v1032
    %v1034 = vpop.f32.mrb[0].mxu0
    %v1035 = vadd.f32 %v874, %v1034
    %1036 = vmatprep.mubr.bf16.mxu0 0
    %1037 = vmatmul.mubr.bf16.gmra.mrb[0].mxu0 %v952
    %v1038 = vpop.f32.mrb[0].mxu0
    %v1039 = vadd.f32 %v879, %v1038
    %v1040 = vpop.f32.mrb[0].mxu0
    %v1041 = vadd.f32 %v879, %v1040
    %v1042 = vpop.f32.mrb[0].mxu0
    %v1043 = vadd.f32 %v884, %v1042
    %v1044 = vpop.f32.mrb[0].mxu0
    %v1045 = vadd.f32 %v884, %v1044
    %1046 = vmatprep.mubr.bf16.mxu0 0
    %1047 = vmatmul.mubr.bf16.gmra.mrb[0].mxu0 %v953
    %v1048 = vpop.f32.mrb[0].mxu0
    %v1049 = vadd.f32 %v889, %v1048
    %v1050 = vpop.f32.mrb[0].mxu0
    %v1051 = vadd.f32 %v889, %v1050
    %v1052 = vpop.f32.mrb[0].mxu0
    %v1053 = vadd.f32 %v894, %v1052
    %v1054 = vpop.f32.mrb[0].mxu0
    %v1055 = vadd.f32 %v894, %v1054
    %1056 = vmatprep.mubr.bf16.mxu0 0
    %1057 = vmatmul.mubr.bf16.gmra.mrb[0].mxu0 %v954
    %v1058 = vpop.f32.mrb[0].mxu0
    %v1059 = vadd.f32 %v899, %v1058
    %v1060 = vpop.f32.mrb[0].mxu0
    %v1061 = vadd.f32 %v899, %v1060
    %v1062 = vpop.f32.mrb[0].mxu0
    %v1063 = vadd.f32 %v904, %v1062
    %v1064 = vpop.f32.mrb[0].mxu0
    %v1065 = vadd.f32 %v904, %v1064
    %1066 = vmatprep.mubr.bf16.mxu0 0
    %1067 = vmatmul.mubr.bf16.gmra.mrb[0].mxu0 %v955
    %v1068 = vpop.f32.mrb[0].mxu0
    %v1069 = vadd.f32 %v909, %v1068
    %v1070 = vpop.f32.mrb[0].mxu0
    %v1071 = vadd.f32 %v909, %v1070
    %v1072 = vpop.f32.mrb[0].mxu0
    %v1073 = vadd.f32 %v914, %v1072
    %v1074 = vpop.f32.mrb[0].mxu0
    %v1075 = vadd.f32 %v914, %v1074
    %1076 = vdwg.mxu0
    %v1077 = vmax.f32 %v999, 0.0
    %v1078 = vmax.f32 %v1001, 0.0
    %v1079 = vmax.f32 %v1003, 0.0
    %v1080 = vmax.f32 %v1005, 0.0
    %v1081 = vmax.f32 %v1009, 0.0
    %v1082 = vmax.f32 %v1011, 0.0
    %v1083 = vmax.f32 %v1013, 0.0
    %v1084 = vmax.f32 %v1015, 0.0
    %v1085 = vmax.f32 %v1019, 0.0
    %v1086 = vmax.f32 %v1021, 0.0
    %v1087 = vmax.f32 %v1023, 0.0
    %v1088 = vmax.f32 %v1025, 0.0
    %v1089 = vmax.f32 %v1029, 0.0
    %v1090 = vmax.f32 %v1031, 0.0
    %v1091 = vmax.f32 %v1033, 0.0
    %v1092 = vmax.f32 %v1035, 0.0
    %v1093 = vmax.f32 %v1039, 0.0
    %v1094 = vmax.f32 %v1041, 0.0
    %v1095 = vmax.f32 %v1043, 0.0
    %v1096 = vmax.f32 %v1045, 0.0
    %v1097 = vmax.f32 %v1049, 0.0
    %v1098 = vmax.f32 %v1051, 0.0
    %v1099 = vmax.f32 %v1053, 0.0
    %v1100 = vmax.f32 %v1055, 0.0
    %v1101 = vmax.f32 %v1059, 0.0
    %v1102 = vmax.f32 %v1061, 0.0
    %v1103 = vmax.f32 %v1063, 0.0
    %v1104 = vmax.f32 %v1065, 0.0
    %v1105 = vmax.f32 %v1069, 0.0
    %v1106 = vmax.f32 %v1071, 0.0
    %v1107 = vmax.f32 %v1073, 0.0
    %v1108 = vmax.f32 %v1075, 0.0
    %v1109 = vld [vmem:[%s7] sm:$0xf]
    %v1110 = vpack.c.bf16 %v1079, %v1077
    %v1111 = vpack.c.bf16 %v1080, %v1078
    %v1112 = vpack.c.bf16 %v1083, %v1081
    %v1113 = vpack.c.bf16 %v1084, %v1082
    %v1114 = vpack.c.bf16 %v1087, %v1085
    %v1115 = vpack.c.bf16 %v1088, %v1086
    %v1116 = vpack.c.bf16 %v1091, %v1089
    %v1117 = vpack.c.bf16 %v1092, %v1090
    %v1118 = vpack.c.bf16 %v1095, %v1093
    %v1119 = vpack.c.bf16 %v1096, %v1094
    %v1120 = vpack.c.bf16 %v1099, %v1097
    %v1121 = vpack.c.bf16 %v1100, %v1098
    %v1122 = vpack.c.bf16 %v1103, %v1101
    %v1123 = vpack.c.bf16 %v1104, %v1102
    %v1124 = vpack.c.bf16 %v1107, %v1105
    %v1125 = vpack.c.bf16 %v1108, %v1106
    %v1126 = vld [vmem:[%s8] sm:$0xff]
    %1128 = vset.pattern.permute.xlu0 0
    %1129 = vperm.xlu0 %1128, %v1126
    %v1130 = vpop.permute.xlu0 %1129
    %1132 = vmatprep.subr.bf16.mxu0 %v1111
    %1133 = vmatpush1.bf16.msra.mxu0 %v1110
    %1134 = vmatprep.subr.bf16.mxu0 %v1113
    %1135 = vmatpush1.bf16.msra.mxu0 %v1112
    %1136 = vmatprep.subr.bf16.mxu0 %v1115
    %1137 = vmatpush1.bf16.msra.mxu0 %v1114
    %1138 = vmatprep.subr.bf16.mxu0 %v1117
    %1139 = vmatpush1.bf16.msra.mxu0 %v1116
    %1140 = vmatprep.subr.bf16.mxu0 %v1119
    %1141 = vmatpush1.bf16.msra.mxu0 %v1118
    %1142 = vmatprep.subr.bf16.mxu0 %v1121
    %1143 = vmatpush1.bf16.msra.mxu0 %v1120
    %1144 = vmatprep.subr.bf16.mxu0 %v1123
    %1145 = vmatpush1.bf16.msra.mxu0 %v1122
    %1146 = vmatprep.subr.bf16.mxu0 %v1125
    %1147 = vmatpush1.bf16.msra.mxu0 %v1124
    %1148 = vmatprep.subr.bf16.mxu0 0
    %1149 = vmatpush1.bf16.msra.mxu0 0
    %1150 = vmatprep.subr.bf16.mxu0 0
    %1151 = vmatpush1.bf16.msra.mxu0 0
    %1152 = vmatprep.subr.bf16.mxu0 0
    %1153 = vmatpush1.bf16.msra.mxu0 0
    %1154 = vmatprep.subr.bf16.mxu0 0
    %1155 = vmatpush1.bf16.msra.mxu0 0
    %1156 = vmatprep.subr.bf16.mxu0 0
    %1157 = vmatpush1.bf16.msra.mxu0 0
    %1158 = vmatprep.subr.bf16.mxu0 0
    %1159 = vmatpush1.bf16.msra.mxu0 0
    %1160 = vmatprep.subr.bf16.mxu0 0
    %1161 = vmatpush1.bf16.msra.mxu0 0
    %1162 = vmatprep.subr.bf16.mxu0 0
    %1163 = vmatpush1.bf16.msra.mxu0 0
    %1164 = vmatprep.mubr.bf16.mxu0 0
    %1165 = vmatmul.mubr.bf16.gmra.mrb[0].mxu0 %v1109
    %v1166 = vpop.f32.mrb[0].mxu0
    %v1167 = vadd.f32 %v1130, %v1166
    %v1168 = vpop.f32.mrb[0].mxu0
    %v1169 = vadd.f32 %v1130, %v1168
    %v1170 = vpop.f32.mrb[0].mxu0
    %v1171 = vpop.f32.mrb[0].mxu0
    %1172 = vdwg.mxu0
    %v1175 = vcombine.low %v1167, %v1169
    %v1177 = vunpack.c.l.s4 1966171168
    %v1178 = vunpack.c.0.s8 %v1177
    %v1179 = vlaneseq
    %v1180 = vshrl.u32 %v1179, 7
    %v1181 = vsub.s32 %v1178, %v1180
    %v1182 = vrot.slane %v1175, %v1181
    %v1184 = vunpack.c.l.s4 1966171168
    %v1185 = vunpack.c.0.s8 %v1184
    %v1186 = vlaneseq
    %v1187 = vshrl.u32 %v1186, 7
    %v1188 = vsub.s32 %v1185, %v1187
    %v1189 = vrot.slane %v1182, %v1188
    %v1191 = vlaneseq
    %vm1192 = vcmp.ge.s32.totalorder %v1191, 0
    %vm1193 = vcmp.lt.s32.totalorder %v1191, 256
    %vm1194 = vmand %vm1192, %vm1193
    %1195 = vst.msk [vmem:[#allocation2] sm:$0x3] %vm1194, %v1189
    // Predicated region
    $region38: #{tpu_custom_call.1} parent=1 // pred_check
      _
    $region39: #{tpu_custom_call.1} parent=1 // pred_check_branch
      %1197 = sbr.rel (0) target = $region41
    $region40: #{tpu_custom_call.1} parent=1 // pred_region
      %s1199 = ssub.s32 32, 32
      %1200 = vsyncadd [#allocation3], %s1199
      %s1202 = sshll.u32 [#allocation2], 4
      %s1203 = int_to_ptr.vmem [resolvable:$true] %s1202
      %1205 = dma.vmem_to_hbm [thread:$0]  %s1203, 32, %s9, [#allocation3]
    $region41: #{tpu_custom_call.1} parent=1 // pred_fallthru
      _
    // Predicated region
    $region42: #{tpu_custom_call.1} parent=1 // pred_check
      _
    $region43: #{tpu_custom_call.1} parent=1 // pred_check_branch
      %1207 = sbr.rel (0) target = $region45
    $region44: #{tpu_custom_call.1} parent=1 // pred_region
      %1208 = dma.done [#allocation3], 32
    $region45: #{tpu_custom_call.1} parent=1 // pred_fallthru
      _
    %1209 = vsyncpa [#allocation3], 1

</llo_original>
